<compile_context>
chip_gen: v7x
topology: tpu7x:2x2x1
jax: 0.10.0
libtpu: 0.0.40
codegen_flags: <defaults>
</compile_context>

<pallas_src>
import functools

import jax
import jax.numpy as jnp
from jax.experimental import pallas as pl
from jax.experimental.pallas import tpu as pltpu


# ----------------------------------------------------------------------------
# Fused Pallas kernel: L LSTM layers + linear head, single invocation.
# ----------------------------------------------------------------------------
def _fused_lstm_kernel(x_ref, wih0_ref, wihr_ref, whh_ref, b_ref,
                       h0_ref, c0_ref, wlin_ref, blin_ref,
                       preds_ref, state_ref,
                       y_sc,
                       *, num_layers, seq_len, batch_pad, hidden, out_seq):
    T, B, H = seq_len, batch_pad, hidden

    x_in = x_ref[...]                               # (T*B, I) time-major flat
    for layer in range(num_layers):
        wih = wih0_ref[...] if layer == 0 else wihr_ref[layer - 1]  # (I|H, 4H)
        whh = whh_ref[layer]                                        # (H, 4H)
        bias = b_ref[layer]                                         # (1, 4H)

        # Hoisted input projection: one matmul over the whole sequence,
        # bias added once (outside the recurrence).  The g-gate columns of
        # wih / whh / bias are pre-scaled by 2 (see parameter prep).
        gates_x = (jnp.dot(x_in, wih, preferred_element_type=jnp.float32)
                   + bias)                                          # (T*B, 4H)

        h = h0_ref[layer]                                           # (B, H)
        c = c0_ref[layer]                                           # (B, H)
        # Fully unrolled serial recurrence: only h @ W_hh on the critical path.
        for t in range(T):
            g = gates_x[t * B:(t + 1) * B, :] + jnp.dot(
                h, whh, preferred_element_type=jnp.float32)         # (B, 4H)
            # ONE full-width EUP sigmoid; g-gate recovered via
            # tanh(x) = 2*sigmoid(2x) - 1 (exact), so no tanh(g) push.
            sig = jax.nn.sigmoid(g)
            i_g = sig[:, 0 * H:1 * H]
            f_g = sig[:, 1 * H:2 * H]
            g_g = 2.0 * sig[:, 2 * H:3 * H] - 1.0
            o_g = sig[:, 3 * H:4 * H]
            c = f_g * c + i_g * g_g
            h = o_g * jnp.tanh(c)
            y_sc[t * B:(t + 1) * B, :] = h        # aligned (8,*) tile store
        # Packed final state: one (B, 2H) slab per layer.
        state_ref[layer] = jnp.concatenate([h, c], axis=-1)
        if layer + 1 < num_layers:
            x_in = y_sc[...]              # next layer's input, stays in VMEM

    # Linear head over the last `out_seq` time steps (time-major flat rows).
    # Output is lane-dense: out_pad = multiple of 128 columns.
    tail = y_sc[pl.ds((T - out_seq) * B, out_seq * B), :]           # (S*B, H)
    preds_ref[...] = (jnp.dot(tail, wlin_ref[...],
                              preferred_element_type=jnp.float32)
                      + blin_ref[...])


def fused_lstm_forward(x_flat, wih0_t, wihr_t, whh_t, bias, h0, c0,
                       wlin_t, blin, *, seq_len, batch_pad, hidden, out_seq,
                       num_layers, out_pad, input_size):
    kernel = functools.partial(
        _fused_lstm_kernel, num_layers=num_layers, seq_len=seq_len,
        batch_pad=batch_pad, hidden=hidden, out_seq=out_seq)

    T, B, H = seq_len, batch_pad, hidden
    flops = 2 * T * B * input_size * 4 * H              # layer-0 input proj
    flops += 2 * (num_layers - 1) * T * B * H * 4 * H   # other input projs
    flops += 2 * num_layers * T * B * H * 4 * H         # recurrent matmuls
    flops += 2 * out_seq * B * H * out_pad              # linear head
    transcendentals = num_layers * T * B * 5 * H        # sigmoid(4H)+tanh(H)
    bytes_accessed = 4 * (
        x_flat.size + wih0_t.size + wihr_t.size + whh_t.size + bias.size
        + h0.size + c0.size + wlin_t.size + blin.size
        + out_seq * B * out_pad + num_layers * B * 2 * H)

    vmem = pl.BlockSpec(memory_space=pltpu.MemorySpace.VMEM)
    return pl.pallas_call(
        kernel,
        out_shape=(
            jax.ShapeDtypeStruct((out_seq * B, out_pad), jnp.float32),
            jax.ShapeDtypeStruct((num_layers, B, 2 * H), jnp.float32)),
        in_specs=[vmem] * 9,
        out_specs=(vmem, vmem),
        scratch_shapes=[pltpu.VMEM((T * B, H), jnp.float32)],
        cost_estimate=pl.CostEstimate(
            flops=int(flops), transcendentals=int(transcendentals),
            bytes_accessed=int(bytes_accessed)),
    )(x_flat, wih0_t, wihr_t, whh_t, bias, h0, c0, wlin_t, blin)


# ----------------------------------------------------------------------------
# Model wrapper (parameter init + forward glue)
# ----------------------------------------------------------------------------
class LSTMModelPallas:
    def __init__(self, input_size=7, hidden_size=32, output_size=7,
                 num_layers=2, dropout=0.1, output_seq=4, key=None):
        self.input_size = input_size
        self.hidden_size = hidden_size
        self.output_size = output_size
        self.num_layers = num_layers
        self.output_seq = output_seq
        self.dropout = dropout  # not applied in inference forward

        if key is None:
            key = jax.random.PRNGKey(0)
        H = hidden_size
        bound = 1.0 / jnp.sqrt(jnp.float32(H))

        # Original (unscaled, untransposed-gate) parameters; used by the
        # pure-JAX reference.
        self.layers = []
        for l in range(num_layers):
            I = input_size if l == 0 else H
            key, k1, k2, k3, k4 = jax.random.split(key, 5)
            w_ih = jax.random.uniform(k1, (4 * H, I), jnp.float32, -bound, bound)
            w_hh = jax.random.uniform(k2, (4 * H, H), jnp.float32, -bound, bound)
            b_ih = jax.random.uniform(k3, (4 * H,), jnp.float32, -bound, bound)
            b_hh = jax.random.uniform(k4, (4 * H,), jnp.float32, -bound, bound)
            self.layers.append(dict(
                wih_t=w_ih.T,                                   # (I, 4H)
                whh_t=w_hh.T,                                   # (H, 4H)
                bias=(b_ih + b_hh).reshape(1, 4 * H)))          # (1, 4H)

        # Kernel parameters: g-gate columns [2H:3H) pre-scaled by 2 so the
        # kernel can use tanh(x) = 2*sigmoid(2x) - 1 with a single sigmoid.
        def scale_g_cols(w):
            return w.at[..., 2 * H:3 * H].multiply(2.0)

        self.wih0_k = scale_g_cols(self.layers[0]["wih_t"])     # (I, 4H)
        if num_layers > 1:
            self.wihr_k = jnp.stack(
                [scale_g_cols(self.layers[l]["wih_t"])
                 for l in range(1, num_layers)])                # (L-1, H, 4H)
        else:                                                   # dummy, unread
            self.wihr_k = jnp.zeros((1, H, 4 * H), jnp.float32)
        self.whh_k = jnp.stack(
            [scale_g_cols(p["whh_t"]) for p in self.layers])    # (L, H, 4H)
        self.bias_k = jnp.stack(
            [scale_g_cols(p["bias"]) for p in self.layers])     # (L, 1, 4H)

        # Linear head; kernel uses a lane-dense (128-padded) column layout.
        key, k1, k2 = jax.random.split(key, 3)
        lb = 1.0 / jnp.sqrt(jnp.float32(H))
        w_lin = jax.random.uniform(k1, (output_size, H), jnp.float32, -lb, lb)
        b_lin = jax.random.uniform(k2, (output_size,), jnp.float32, -lb, lb)
        self.w_lin_t = w_lin.T                                  # (H, O)
        self.b_lin = b_lin.reshape(1, output_size)              # (1, O)

        self.out_pad = ((output_size + 127) // 128) * 128
        self.w_lin_k = jnp.zeros((H, self.out_pad), jnp.float32
                                 ).at[:, :output_size].set(self.w_lin_t)
        self.b_lin_k = jnp.zeros((1, self.out_pad), jnp.float32
                                 ).at[:, :output_size].set(self.b_lin)

    def __call__(self, input_seq, state):
        """input_seq: (B, T, input_size); state = (h0, c0), each (L, B, H)."""
        h0, c0 = state
        B, T, _ = input_seq.shape
        assert self.output_seq <= T
        B_pad = ((B + 7) // 8) * 8          # sublane-align the batch

        # Time-major flat layout (row = t*B_pad + b), zero-padded batch rows.
        x_tm = jnp.transpose(input_seq, (1, 0, 2))              # (T, B, I)
        x_tm = jnp.pad(x_tm, ((0, 0), (0, B_pad - B), (0, 0)))
        x_flat = x_tm.reshape(T * B_pad, self.input_size)

        h0_p = jnp.pad(h0, ((0, 0), (0, B_pad - B), (0, 0)))
        c0_p = jnp.pad(c0, ((0, 0), (0, B_pad - B), (0, 0)))

        preds_flat, state_packed = fused_lstm_forward(
            x_flat, self.wih0_k, self.wihr_k, self.whh_k, self.bias_k,
            h0_p, c0_p, self.w_lin_k, self.b_lin_k,
            seq_len=T, batch_pad=B_pad, hidden=self.hidden_size,
            out_seq=self.output_seq, num_layers=self.num_layers,
            out_pad=self.out_pad, input_size=self.input_size)

        preds = preds_flat.reshape(self.output_seq, B_pad, self.out_pad)
        preds = jnp.transpose(preds[:, :B, :self.output_size], (1, 0, 2))
        h_n = state_packed[:, :B, :self.hidden_size]
        c_n = state_packed[:, :B, self.hidden_size:]
        return preds, (h_n, c_n)


# ----------------------------------------------------------------------------
# Pure-JAX reference (for correctness check) — uses the UNscaled parameters.
# ----------------------------------------------------------------------------
def reference_forward(model, input_seq, state):
    h0, c0 = state
    x = input_seq                                                # (B, T, I)
    H = model.hidden_size
    h_out, c_out = [], []
    for l, p in enumerate(model.layers):
        h, c = h0[l], c0[l]
        ys = []
        for t in range(x.shape[1]):
            g = x[:, t, :] @ p["wih_t"] + h @ p["whh_t"] + p["bias"]
            i = jax.nn.sigmoid(g[:, 0 * H:1 * H])
            f = jax.nn.sigmoid(g[:, 1 * H:2 * H])
            gg = jnp.tanh(g[:, 2 * H:3 * H])
            o = jax.nn.sigmoid(g[:, 3 * H:4 * H])
            c = f * c + i * gg
            h = o * jnp.tanh(c)
            ys.append(h)
        x = jnp.stack(ys, axis=1)
        h_out.append(h)
        c_out.append(c)
    tail = x[:, -model.output_seq:, :]
    preds = tail @ model.w_lin_t + model.b_lin
    return preds, (jnp.stack(h_out), jnp.stack(c_out))


# ----------------------------------------------------------------------------
if __name__ == "__main__":
    B, T = 2, 8
    INPUT, HIDDEN, OUTPUT = 7, 32, 7
    LAYERS, OUT_SEQ = 2, 4

    key = jax.random.PRNGKey(0)
    k_model, k_x, k_h, k_c = jax.random.split(key, 4)

    model = LSTMModelPallas(input_size=INPUT, hidden_size=HIDDEN,
                            output_size=OUTPUT, num_layers=LAYERS,
                            dropout=0.1, output_seq=OUT_SEQ, key=k_model)

    x = jax.random.normal(k_x, (B, T, INPUT), jnp.float32)
    h0 = jax.random.normal(k_h, (LAYERS, B, HIDDEN), jnp.float32) * 0.1
    c0 = jax.random.normal(k_c, (LAYERS, B, HIDDEN), jnp.float32) * 0.1

    preds, (h_n, c_n) = model(x, (h0, c0))
    jax.block_until_ready((preds, h_n, c_n))

    ref_preds, (ref_h, ref_c) = reference_forward(model, x, (h0, c0))
    assert preds.shape == (B, OUT_SEQ, OUTPUT)
    assert h_n.shape == (LAYERS, B, HIDDEN) and c_n.shape == (LAYERS, B, HIDDEN)
    assert jnp.allclose(preds, ref_preds, rtol=1e-4, atol=1e-4)
    assert jnp.allclose(h_n, ref_h, rtol=1e-4, atol=1e-4)
    assert jnp.allclose(c_n, ref_c, rtol=1e-4, atol=1e-4)

    print("KERNEL_OK")
</pallas_src>

<mosaic_0001>
module attributes {stable_mosaic.version = 11 : i64} {
  func.func @_fused_lstm_kernel(%arg0: memref<64x7xf32, #tpu.memory_space<vmem>>, %arg1: memref<7x128xf32, #tpu.memory_space<vmem>>, %arg2: memref<1x32x128xf32, #tpu.memory_space<vmem>>, %arg3: memref<2x32x128xf32, #tpu.memory_space<vmem>>, %arg4: memref<2x1x128xf32, #tpu.memory_space<vmem>>, %arg5: memref<2x8x32xf32, #tpu.memory_space<vmem>>, %arg6: memref<2x8x32xf32, #tpu.memory_space<vmem>>, %arg7: memref<32x128xf32, #tpu.memory_space<vmem>>, %arg8: memref<1x128xf32, #tpu.memory_space<vmem>>, %arg9: memref<32x128xf32, #tpu.memory_space<vmem>>, %arg10: memref<2x8x64xf32, #tpu.memory_space<vmem>>, %arg11: memref<64x32xf32, #tpu.memory_space<vmem>>) attributes {dimension_semantics = [], scalar_prefetch = 0 : i64, scratch_operands = 1 : i64, tpu.core_type = #tpu.core_type<tc>} {
    %c0 = arith.constant 0 : index
    %c0_0 = arith.constant 0 : index
    %0 = vector.load %arg0[%c0, %c0_0] : memref<64x7xf32, #tpu.memory_space<vmem>>, vector<64x7xf32>
    %c0_1 = arith.constant 0 : index
    %c0_2 = arith.constant 0 : index
    %1 = vector.load %arg1[%c0_1, %c0_2] : memref<7x128xf32, #tpu.memory_space<vmem>>, vector<7x128xf32>
    %c0_3 = arith.constant 0 : index
    %c0_4 = arith.constant 0 : index
    %c0_5 = arith.constant 0 : index
    %2 = vector.load %arg3[%c0_3, %c0_4, %c0_5] : memref<2x32x128xf32, #tpu.memory_space<vmem>>, vector<1x32x128xf32>
    %3 = vector.shape_cast %2 : vector<1x32x128xf32> to vector<32x128xf32>
    %c0_6 = arith.constant 0 : index
    %c0_7 = arith.constant 0 : index
    %c0_8 = arith.constant 0 : index
    %4 = vector.load %arg4[%c0_6, %c0_7, %c0_8] : memref<2x1x128xf32, #tpu.memory_space<vmem>>, vector<1x1x128xf32>
    %5 = vector.shape_cast %4 : vector<1x1x128xf32> to vector<1x128xf32>
    %cst = arith.constant dense<0.000000e+00> : vector<64x128xf32>
    %6 = tpu.matmul %0, %1, %cst {dimension_numbers = #tpu.dot_dimension_numbers<[1], [0], [0], [1], [0, 0, 1, 1], [], []>} : vector<64x7xf32>, vector<7x128xf32>, vector<64x128xf32> -> vector<64x128xf32>
    %7 = vector.broadcast %5 : vector<1x128xf32> to vector<64x128xf32>
    %8 = arith.addf %6, %7 : vector<64x128xf32>
    %c0_9 = arith.constant 0 : index
    %c0_10 = arith.constant 0 : index
    %c0_11 = arith.constant 0 : index
    %9 = vector.load %arg5[%c0_9, %c0_10, %c0_11] : memref<2x8x32xf32, #tpu.memory_space<vmem>>, vector<1x8x32xf32>
    %10 = vector.shape_cast %9 : vector<1x8x32xf32> to vector<8x32xf32>
    %c0_12 = arith.constant 0 : index
    %c0_13 = arith.constant 0 : index
    %c0_14 = arith.constant 0 : index
    %11 = vector.load %arg6[%c0_12, %c0_13, %c0_14] : memref<2x8x32xf32, #tpu.memory_space<vmem>>, vector<1x8x32xf32>
    %12 = vector.shape_cast %11 : vector<1x8x32xf32> to vector<8x32xf32>
    %13 = vector.extract_strided_slice %8 {offsets = [0, 0], sizes = [8, 128], strides = [1, 1]} : vector<64x128xf32> to vector<8x128xf32>
    %cst_15 = arith.constant dense<0.000000e+00> : vector<8x128xf32>
    %14 = tpu.matmul %10, %3, %cst_15 {dimension_numbers = #tpu.dot_dimension_numbers<[1], [0], [0], [1], [0, 0, 1, 1], [], []>} : vector<8x32xf32>, vector<32x128xf32>, vector<8x128xf32> -> vector<8x128xf32>
    %15 = arith.addf %13, %14 : vector<8x128xf32>
    %16 = arith.negf %15 : vector<8x128xf32>
    %17 = math.exp %16 : vector<8x128xf32>
    %cst_16 = arith.constant 1.000000e+00 : f32
    %18 = vector.broadcast %cst_16 : f32 to vector<8x128xf32>
    %19 = arith.addf %18, %17 : vector<8x128xf32>
    %20 = arith.divf %18, %19 : vector<8x128xf32>
    %21 = vector.extract_strided_slice %20 {offsets = [0, 0], sizes = [8, 32], strides = [1, 1]} : vector<8x128xf32> to vector<8x32xf32>
    %22 = vector.extract_strided_slice %20 {offsets = [0, 32], sizes = [8, 32], strides = [1, 1]} : vector<8x128xf32> to vector<8x32xf32>
    %23 = vector.extract_strided_slice %20 {offsets = [0, 64], sizes = [8, 32], strides = [1, 1]} : vector<8x128xf32> to vector<8x32xf32>
    %cst_17 = arith.constant 2.000000e+00 : f32
    %24 = vector.broadcast %cst_17 : f32 to vector<8x32xf32>
    %25 = arith.mulf %24, %23 : vector<8x32xf32>
    %cst_18 = arith.constant 1.000000e+00 : f32
    %26 = vector.broadcast %cst_18 : f32 to vector<8x32xf32>
    %27 = arith.subf %25, %26 : vector<8x32xf32>
    %28 = vector.extract_strided_slice %20 {offsets = [0, 96], sizes = [8, 32], strides = [1, 1]} : vector<8x128xf32> to vector<8x32xf32>
    %29 = arith.mulf %22, %12 : vector<8x32xf32>
    %30 = arith.mulf %21, %27 : vector<8x32xf32>
    %31 = arith.addf %29, %30 : vector<8x32xf32>
    %32 = math.tanh %31 : vector<8x32xf32>
    %33 = arith.mulf %28, %32 : vector<8x32xf32>
    %c0_19 = arith.constant 0 : index
    %c0_20 = arith.constant 0 : index
    %34 = vector.load %arg11[%c0_19, %c0_20] : memref<64x32xf32, #tpu.memory_space<vmem>>, vector<8x32xf32>
    tpu.vector_store %arg11[%c0_19, %c0_20], %33 {strides = array<i32>} : memref<64x32xf32, #tpu.memory_space<vmem>>, vector<8x32xf32>,
    %35 = vector.extract_strided_slice %8 {offsets = [8, 0], sizes = [8, 128], strides = [1, 1]} : vector<64x128xf32> to vector<8x128xf32>
    %cst_21 = arith.constant dense<0.000000e+00> : vector<8x128xf32>
    %36 = tpu.matmul %33, %3, %cst_21 {dimension_numbers = #tpu.dot_dimension_numbers<[1], [0], [0], [1], [0, 0, 1, 1], [], []>} : vector<8x32xf32>, vector<32x128xf32>, vector<8x128xf32> -> vector<8x128xf32>
    %37 = arith.addf %35, %36 : vector<8x128xf32>
    %38 = arith.negf %37 : vector<8x128xf32>
    %39 = math.exp %38 : vector<8x128xf32>
    %cst_22 = arith.constant 1.000000e+00 : f32
    %40 = vector.broadcast %cst_22 : f32 to vector<8x128xf32>
    %41 = arith.addf %40, %39 : vector<8x128xf32>
    %42 = arith.divf %40, %41 : vector<8x128xf32>
    %43 = vector.extract_strided_slice %42 {offsets = [0, 0], sizes = [8, 32], strides = [1, 1]} : vector<8x128xf32> to vector<8x32xf32>
    %44 = vector.extract_strided_slice %42 {offsets = [0, 32], sizes = [8, 32], strides = [1, 1]} : vector<8x128xf32> to vector<8x32xf32>
    %45 = vector.extract_strided_slice %42 {offsets = [0, 64], sizes = [8, 32], strides = [1, 1]} : vector<8x128xf32> to vector<8x32xf32>
    %cst_23 = arith.constant 2.000000e+00 : f32
    %46 = vector.broadcast %cst_23 : f32 to vector<8x32xf32>
    %47 = arith.mulf %46, %45 : vector<8x32xf32>
    %cst_24 = arith.constant 1.000000e+00 : f32
    %48 = vector.broadcast %cst_24 : f32 to vector<8x32xf32>
    %49 = arith.subf %47, %48 : vector<8x32xf32>
    %50 = vector.extract_strided_slice %42 {offsets = [0, 96], sizes = [8, 32], strides = [1, 1]} : vector<8x128xf32> to vector<8x32xf32>
    %51 = arith.mulf %44, %31 : vector<8x32xf32>
    %52 = arith.mulf %43, %49 : vector<8x32xf32>
    %53 = arith.addf %51, %52 : vector<8x32xf32>
    %54 = math.tanh %53 : vector<8x32xf32>
    %55 = arith.mulf %50, %54 : vector<8x32xf32>
    %c8 = arith.constant 8 : index
    %c0_25 = arith.constant 0 : index
    %56 = vector.load %arg11[%c8, %c0_25] : memref<64x32xf32, #tpu.memory_space<vmem>>, vector<8x32xf32>
    tpu.vector_store %arg11[%c8, %c0_25], %55 {strides = array<i32>} : memref<64x32xf32, #tpu.memory_space<vmem>>, vector<8x32xf32>,
    %57 = vector.extract_strided_slice %8 {offsets = [16, 0], sizes = [8, 128], strides = [1, 1]} : vector<64x128xf32> to vector<8x128xf32>
    %cst_26 = arith.constant dense<0.000000e+00> : vector<8x128xf32>
    %58 = tpu.matmul %55, %3, %cst_26 {dimension_numbers = #tpu.dot_dimension_numbers<[1], [0], [0], [1], [0, 0, 1, 1], [], []>} : vector<8x32xf32>, vector<32x128xf32>, vector<8x128xf32> -> vector<8x128xf32>
    %59 = arith.addf %57, %58 : vector<8x128xf32>
    %60 = arith.negf %59 : vector<8x128xf32>
    %61 = math.exp %60 : vector<8x128xf32>
    %cst_27 = arith.constant 1.000000e+00 : f32
    %62 = vector.broadcast %cst_27 : f32 to vector<8x128xf32>
    %63 = arith.addf %62, %61 : vector<8x128xf32>
    %64 = arith.divf %62, %63 : vector<8x128xf32>
    %65 = vector.extract_strided_slice %64 {offsets = [0, 0], sizes = [8, 32], strides = [1, 1]} : vector<8x128xf32> to vector<8x32xf32>
    %66 = vector.extract_strided_slice %64 {offsets = [0, 32], sizes = [8, 32], strides = [1, 1]} : vector<8x128xf32> to vector<8x32xf32>
    %67 = vector.extract_strided_slice %64 {offsets = [0, 64], sizes = [8, 32], strides = [1, 1]} : vector<8x128xf32> to vector<8x32xf32>
    %cst_28 = arith.constant 2.000000e+00 : f32
    %68 = vector.broadcast %cst_28 : f32 to vector<8x32xf32>
    %69 = arith.mulf %68, %67 : vector<8x32xf32>
    %cst_29 = arith.constant 1.000000e+00 : f32
    %70 = vector.broadcast %cst_29 : f32 to vector<8x32xf32>
    %71 = arith.subf %69, %70 : vector<8x32xf32>
    %72 = vector.extract_strided_slice %64 {offsets = [0, 96], sizes = [8, 32], strides = [1, 1]} : vector<8x128xf32> to vector<8x32xf32>
    %73 = arith.mulf %66, %53 : vector<8x32xf32>
    %74 = arith.mulf %65, %71 : vector<8x32xf32>
    %75 = arith.addf %73, %74 : vector<8x32xf32>
    %76 = math.tanh %75 : vector<8x32xf32>
    %77 = arith.mulf %72, %76 : vector<8x32xf32>
    %c16 = arith.constant 16 : index
    %c0_30 = arith.constant 0 : index
    %78 = vector.load %arg11[%c16, %c0_30] : memref<64x32xf32, #tpu.memory_space<vmem>>, vector<8x32xf32>
    tpu.vector_store %arg11[%c16, %c0_30], %77 {strides = array<i32>} : memref<64x32xf32, #tpu.memory_space<vmem>>, vector<8x32xf32>,
    %79 = vector.extract_strided_slice %8 {offsets = [24, 0], sizes = [8, 128], strides = [1, 1]} : vector<64x128xf32> to vector<8x128xf32>
    %cst_31 = arith.constant dense<0.000000e+00> : vector<8x128xf32>
    %80 = tpu.matmul %77, %3, %cst_31 {dimension_numbers = #tpu.dot_dimension_numbers<[1], [0], [0], [1], [0, 0, 1, 1], [], []>} : vector<8x32xf32>, vector<32x128xf32>, vector<8x128xf32> -> vector<8x128xf32>
    %81 = arith.addf %79, %80 : vector<8x128xf32>
    %82 = arith.negf %81 : vector<8x128xf32>
    %83 = math.exp %82 : vector<8x128xf32>
    %cst_32 = arith.constant 1.000000e+00 : f32
    %84 = vector.broadcast %cst_32 : f32 to vector<8x128xf32>
    %85 = arith.addf %84, %83 : vector<8x128xf32>
    %86 = arith.divf %84, %85 : vector<8x128xf32>
    %87 = vector.extract_strided_slice %86 {offsets = [0, 0], sizes = [8, 32], strides = [1, 1]} : vector<8x128xf32> to vector<8x32xf32>
    %88 = vector.extract_strided_slice %86 {offsets = [0, 32], sizes = [8, 32], strides = [1, 1]} : vector<8x128xf32> to vector<8x32xf32>
    %89 = vector.extract_strided_slice %86 {offsets = [0, 64], sizes = [8, 32], strides = [1, 1]} : vector<8x128xf32> to vector<8x32xf32>
    %cst_33 = arith.constant 2.000000e+00 : f32
    %90 = vector.broadcast %cst_33 : f32 to vector<8x32xf32>
    %91 = arith.mulf %90, %89 : vector<8x32xf32>
    %cst_34 = arith.constant 1.000000e+00 : f32
    %92 = vector.broadcast %cst_34 : f32 to vector<8x32xf32>
    %93 = arith.subf %91, %92 : vector<8x32xf32>
    %94 = vector.extract_strided_slice %86 {offsets = [0, 96], sizes = [8, 32], strides = [1, 1]} : vector<8x128xf32> to vector<8x32xf32>
    %95 = arith.mulf %88, %75 : vector<8x32xf32>
    %96 = arith.mulf %87, %93 : vector<8x32xf32>
    %97 = arith.addf %95, %96 : vector<8x32xf32>
    %98 = math.tanh %97 : vector<8x32xf32>
    %99 = arith.mulf %94, %98 : vector<8x32xf32>
    %c24 = arith.constant 24 : index
    %c0_35 = arith.constant 0 : index
    %100 = vector.load %arg11[%c24, %c0_35] : memref<64x32xf32, #tpu.memory_space<vmem>>, vector<8x32xf32>
    tpu.vector_store %arg11[%c24, %c0_35], %99 {strides = array<i32>} : memref<64x32xf32, #tpu.memory_space<vmem>>, vector<8x32xf32>,
    %101 = vector.extract_strided_slice %8 {offsets = [32, 0], sizes = [8, 128], strides = [1, 1]} : vector<64x128xf32> to vector<8x128xf32>
    %cst_36 = arith.constant dense<0.000000e+00> : vector<8x128xf32>
    %102 = tpu.matmul %99, %3, %cst_36 {dimension_numbers = #tpu.dot_dimension_numbers<[1], [0], [0], [1], [0, 0, 1, 1], [], []>} : vector<8x32xf32>, vector<32x128xf32>, vector<8x128xf32> -> vector<8x128xf32>
    %103 = arith.addf %101, %102 : vector<8x128xf32>
    %104 = arith.negf %103 : vector<8x128xf32>
    %105 = math.exp %104 : vector<8x128xf32>
    %cst_37 = arith.constant 1.000000e+00 : f32
    %106 = vector.broadcast %cst_37 : f32 to vector<8x128xf32>
    %107 = arith.addf %106, %105 : vector<8x128xf32>
    %108 = arith.divf %106, %107 : vector<8x128xf32>
    %109 = vector.extract_strided_slice %108 {offsets = [0, 0], sizes = [8, 32], strides = [1, 1]} : vector<8x128xf32> to vector<8x32xf32>
    %110 = vector.extract_strided_slice %108 {offsets = [0, 32], sizes = [8, 32], strides = [1, 1]} : vector<8x128xf32> to vector<8x32xf32>
    %111 = vector.extract_strided_slice %108 {offsets = [0, 64], sizes = [8, 32], strides = [1, 1]} : vector<8x128xf32> to vector<8x32xf32>
    %cst_38 = arith.constant 2.000000e+00 : f32
    %112 = vector.broadcast %cst_38 : f32 to vector<8x32xf32>
    %113 = arith.mulf %112, %111 : vector<8x32xf32>
    %cst_39 = arith.constant 1.000000e+00 : f32
    %114 = vector.broadcast %cst_39 : f32 to vector<8x32xf32>
    %115 = arith.subf %113, %114 : vector<8x32xf32>
    %116 = vector.extract_strided_slice %108 {offsets = [0, 96], sizes = [8, 32], strides = [1, 1]} : vector<8x128xf32> to vector<8x32xf32>
    %117 = arith.mulf %110, %97 : vector<8x32xf32>
    %118 = arith.mulf %109, %115 : vector<8x32xf32>
    %119 = arith.addf %117, %118 : vector<8x32xf32>
    %120 = math.tanh %119 : vector<8x32xf32>
    %121 = arith.mulf %116, %120 : vector<8x32xf32>
    %c32 = arith.constant 32 : index
    %c0_40 = arith.constant 0 : index
    %122 = vector.load %arg11[%c32, %c0_40] : memref<64x32xf32, #tpu.memory_space<vmem>>, vector<8x32xf32>
    tpu.vector_store %arg11[%c32, %c0_40], %121 {strides = array<i32>} : memref<64x32xf32, #tpu.memory_space<vmem>>, vector<8x32xf32>,
    %123 = vector.extract_strided_slice %8 {offsets = [40, 0], sizes = [8, 128], strides = [1, 1]} : vector<64x128xf32> to vector<8x128xf32>
    %cst_41 = arith.constant dense<0.000000e+00> : vector<8x128xf32>
    %124 = tpu.matmul %121, %3, %cst_41 {dimension_numbers = #tpu.dot_dimension_numbers<[1], [0], [0], [1], [0, 0, 1, 1], [], []>} : vector<8x32xf32>, vector<32x128xf32>, vector<8x128xf32> -> vector<8x128xf32>
    %125 = arith.addf %123, %124 : vector<8x128xf32>
    %126 = arith.negf %125 : vector<8x128xf32>
    %127 = math.exp %126 : vector<8x128xf32>
    %cst_42 = arith.constant 1.000000e+00 : f32
    %128 = vector.broadcast %cst_42 : f32 to vector<8x128xf32>
    %129 = arith.addf %128, %127 : vector<8x128xf32>
    %130 = arith.divf %128, %129 : vector<8x128xf32>
    %131 = vector.extract_strided_slice %130 {offsets = [0, 0], sizes = [8, 32], strides = [1, 1]} : vector<8x128xf32> to vector<8x32xf32>
    %132 = vector.extract_strided_slice %130 {offsets = [0, 32], sizes = [8, 32], strides = [1, 1]} : vector<8x128xf32> to vector<8x32xf32>
    %133 = vector.extract_strided_slice %130 {offsets = [0, 64], sizes = [8, 32], strides = [1, 1]} : vector<8x128xf32> to vector<8x32xf32>
    %cst_43 = arith.constant 2.000000e+00 : f32
    %134 = vector.broadcast %cst_43 : f32 to vector<8x32xf32>
    %135 = arith.mulf %134, %133 : vector<8x32xf32>
    %cst_44 = arith.constant 1.000000e+00 : f32
    %136 = vector.broadcast %cst_44 : f32 to vector<8x32xf32>
    %137 = arith.subf %135, %136 : vector<8x32xf32>
    %138 = vector.extract_strided_slice %130 {offsets = [0, 96], sizes = [8, 32], strides = [1, 1]} : vector<8x128xf32> to vector<8x32xf32>
    %139 = arith.mulf %132, %119 : vector<8x32xf32>
    %140 = arith.mulf %131, %137 : vector<8x32xf32>
    %141 = arith.addf %139, %140 : vector<8x32xf32>
    %142 = math.tanh %141 : vector<8x32xf32>
    %143 = arith.mulf %138, %142 : vector<8x32xf32>
    %c40 = arith.constant 40 : index
    %c0_45 = arith.constant 0 : index
    %144 = vector.load %arg11[%c40, %c0_45] : memref<64x32xf32, #tpu.memory_space<vmem>>, vector<8x32xf32>
    tpu.vector_store %arg11[%c40, %c0_45], %143 {strides = array<i32>} : memref<64x32xf32, #tpu.memory_space<vmem>>, vector<8x32xf32>,
    %145 = vector.extract_strided_slice %8 {offsets = [48, 0], sizes = [8, 128], strides = [1, 1]} : vector<64x128xf32> to vector<8x128xf32>
    %cst_46 = arith.constant dense<0.000000e+00> : vector<8x128xf32>
    %146 = tpu.matmul %143, %3, %cst_46 {dimension_numbers = #tpu.dot_dimension_numbers<[1], [0], [0], [1], [0, 0, 1, 1], [], []>} : vector<8x32xf32>, vector<32x128xf32>, vector<8x128xf32> -> vector<8x128xf32>
    %147 = arith.addf %145, %146 : vector<8x128xf32>
    %148 = arith.negf %147 : vector<8x128xf32>
    %149 = math.exp %148 : vector<8x128xf32>
    %cst_47 = arith.constant 1.000000e+00 : f32
    %150 = vector.broadcast %cst_47 : f32 to vector<8x128xf32>
    %151 = arith.addf %150, %149 : vector<8x128xf32>
    %152 = arith.divf %150, %151 : vector<8x128xf32>
    %153 = vector.extract_strided_slice %152 {offsets = [0, 0], sizes = [8, 32], strides = [1, 1]} : vector<8x128xf32> to vector<8x32xf32>
    %154 = vector.extract_strided_slice %152 {offsets = [0, 32], sizes = [8, 32], strides = [1, 1]} : vector<8x128xf32> to vector<8x32xf32>
    %155 = vector.extract_strided_slice %152 {offsets = [0, 64], sizes = [8, 32], strides = [1, 1]} : vector<8x128xf32> to vector<8x32xf32>
    %cst_48 = arith.constant 2.000000e+00 : f32
    %156 = vector.broadcast %cst_48 : f32 to vector<8x32xf32>
    %157 = arith.mulf %156, %155 : vector<8x32xf32>
    %cst_49 = arith.constant 1.000000e+00 : f32
    %158 = vector.broadcast %cst_49 : f32 to vector<8x32xf32>
    %159 = arith.subf %157, %158 : vector<8x32xf32>
    %160 = vector.extract_strided_slice %152 {offsets = [0, 96], sizes = [8, 32], strides = [1, 1]} : vector<8x128xf32> to vector<8x32xf32>
    %161 = arith.mulf %154, %141 : vector<8x32xf32>
    %162 = arith.mulf %153, %159 : vector<8x32xf32>
    %163 = arith.addf %161, %162 : vector<8x32xf32>
    %164 = math.tanh %163 : vector<8x32xf32>
    %165 = arith.mulf %160, %164 : vector<8x32xf32>
    %c48 = arith.constant 48 : index
    %c0_50 = arith.constant 0 : index
    %166 = vector.load %arg11[%c48, %c0_50] : memref<64x32xf32, #tpu.memory_space<vmem>>, vector<8x32xf32>
    tpu.vector_store %arg11[%c48, %c0_50], %165 {strides = array<i32>} : memref<64x32xf32, #tpu.memory_space<vmem>>, vector<8x32xf32>,
    %167 = vector.extract_strided_slice %8 {offsets = [56, 0], sizes = [8, 128], strides = [1, 1]} : vector<64x128xf32> to vector<8x128xf32>
    %cst_51 = arith.constant dense<0.000000e+00> : vector<8x128xf32>
    %168 = tpu.matmul %165, %3, %cst_51 {dimension_numbers = #tpu.dot_dimension_numbers<[1], [0], [0], [1], [0, 0, 1, 1], [], []>} : vector<8x32xf32>, vector<32x128xf32>, vector<8x128xf32> -> vector<8x128xf32>
    %169 = arith.addf %167, %168 : vector<8x128xf32>
    %170 = arith.negf %169 : vector<8x128xf32>
    %171 = math.exp %170 : vector<8x128xf32>
    %cst_52 = arith.constant 1.000000e+00 : f32
    %172 = vector.broadcast %cst_52 : f32 to vector<8x128xf32>
    %173 = arith.addf %172, %171 : vector<8x128xf32>
    %174 = arith.divf %172, %173 : vector<8x128xf32>
    %175 = vector.extract_strided_slice %174 {offsets = [0, 0], sizes = [8, 32], strides = [1, 1]} : vector<8x128xf32> to vector<8x32xf32>
    %176 = vector.extract_strided_slice %174 {offsets = [0, 32], sizes = [8, 32], strides = [1, 1]} : vector<8x128xf32> to vector<8x32xf32>
    %177 = vector.extract_strided_slice %174 {offsets = [0, 64], sizes = [8, 32], strides = [1, 1]} : vector<8x128xf32> to vector<8x32xf32>
    %cst_53 = arith.constant 2.000000e+00 : f32
    %178 = vector.broadcast %cst_53 : f32 to vector<8x32xf32>
    %179 = arith.mulf %178, %177 : vector<8x32xf32>
    %cst_54 = arith.constant 1.000000e+00 : f32
    %180 = vector.broadcast %cst_54 : f32 to vector<8x32xf32>
    %181 = arith.subf %179, %180 : vector<8x32xf32>
    %182 = vector.extract_strided_slice %174 {offsets = [0, 96], sizes = [8, 32], strides = [1, 1]} : vector<8x128xf32> to vector<8x32xf32>
    %183 = arith.mulf %176, %163 : vector<8x32xf32>
    %184 = arith.mulf %175, %181 : vector<8x32xf32>
    %185 = arith.addf %183, %184 : vector<8x32xf32>
    %186 = math.tanh %185 : vector<8x32xf32>
    %187 = arith.mulf %182, %186 : vector<8x32xf32>
    %c56 = arith.constant 56 : index
    %c0_55 = arith.constant 0 : index
    %188 = vector.load %arg11[%c56, %c0_55] : memref<64x32xf32, #tpu.memory_space<vmem>>, vector<8x32xf32>
    tpu.vector_store %arg11[%c56, %c0_55], %187 {strides = array<i32>} : memref<64x32xf32, #tpu.memory_space<vmem>>, vector<8x32xf32>,
    %189 = tpu.concatenate %187, %185 in 1 : vector<8x32xf32>, vector<8x32xf32> -> vector<8x64xf32>
    %c0_56 = arith.constant 0 : index
    %c0_57 = arith.constant 0 : index
    %c0_58 = arith.constant 0 : index
    %190 = vector.load %arg10[%c0_56, %c0_57, %c0_58] : memref<2x8x64xf32, #tpu.memory_space<vmem>>, vector<1x8x64xf32>
    %191 = vector.shape_cast %190 : vector<1x8x64xf32> to vector<8x64xf32>
    %192 = vector.shape_cast %189 : vector<8x64xf32> to vector<1x8x64xf32>
    tpu.vector_store %arg10[%c0_56, %c0_57, %c0_58], %192 {strides = array<i32>} : memref<2x8x64xf32, #tpu.memory_space<vmem>>, vector<1x8x64xf32>,
    %c0_59 = arith.constant 0 : index
    %c0_60 = arith.constant 0 : index
    %193 = vector.load %arg11[%c0_59, %c0_60] : memref<64x32xf32, #tpu.memory_space<vmem>>, vector<64x32xf32>
    %c0_61 = arith.constant 0 : index
    %c0_62 = arith.constant 0 : index
    %c0_63 = arith.constant 0 : index
    %194 = vector.load %arg2[%c0_61, %c0_62, %c0_63] : memref<1x32x128xf32, #tpu.memory_space<vmem>>, vector<1x32x128xf32>
    %195 = vector.shape_cast %194 : vector<1x32x128xf32> to vector<32x128xf32>
    %c1 = arith.constant 1 : index
    %c0_64 = arith.constant 0 : index
    %c0_65 = arith.constant 0 : index
    %196 = vector.load %arg3[%c1, %c0_64, %c0_65] : memref<2x32x128xf32, #tpu.memory_space<vmem>>, vector<1x32x128xf32>
    %197 = vector.shape_cast %196 : vector<1x32x128xf32> to vector<32x128xf32>
    %c1_66 = arith.constant 1 : index
    %c0_67 = arith.constant 0 : index
    %c0_68 = arith.constant 0 : index
    %198 = vector.load %arg4[%c1_66, %c0_67, %c0_68] : memref<2x1x128xf32, #tpu.memory_space<vmem>>, vector<1x1x128xf32>
    %199 = vector.shape_cast %198 : vector<1x1x128xf32> to vector<1x128xf32>
    %cst_69 = arith.constant dense<0.000000e+00> : vector<64x128xf32>
    %200 = tpu.matmul %193, %195, %cst_69 {dimension_numbers = #tpu.dot_dimension_numbers<[1], [0], [0], [1], [0, 0, 1, 1], [], []>} : vector<64x32xf32>, vector<32x128xf32>, vector<64x128xf32> -> vector<64x128xf32>
    %201 = vector.broadcast %199 : vector<1x128xf32> to vector<64x128xf32>
    %202 = arith.addf %200, %201 : vector<64x128xf32>
    %c1_70 = arith.constant 1 : index
    %c0_71 = arith.constant 0 : index
    %c0_72 = arith.constant 0 : index
    %203 = vector.load %arg5[%c1_70, %c0_71, %c0_72] : memref<2x8x32xf32, #tpu.memory_space<vmem>>, vector<1x8x32xf32>
    %204 = vector.shape_cast %203 : vector<1x8x32xf32> to vector<8x32xf32>
    %c1_73 = arith.constant 1 : index
    %c0_74 = arith.constant 0 : index
    %c0_75 = arith.constant 0 : index
    %205 = vector.load %arg6[%c1_73, %c0_74, %c0_75] : memref<2x8x32xf32, #tpu.memory_space<vmem>>, vector<1x8x32xf32>
    %206 = vector.shape_cast %205 : vector<1x8x32xf32> to vector<8x32xf32>
    %207 = vector.extract_strided_slice %202 {offsets = [0, 0], sizes = [8, 128], strides = [1, 1]} : vector<64x128xf32> to vector<8x128xf32>
    %cst_76 = arith.constant dense<0.000000e+00> : vector<8x128xf32>
    %208 = tpu.matmul %204, %197, %cst_76 {dimension_numbers = #tpu.dot_dimension_numbers<[1], [0], [0], [1], [0, 0, 1, 1], [], []>} : vector<8x32xf32>, vector<32x128xf32>, vector<8x128xf32> -> vector<8x128xf32>
    %209 = arith.addf %207, %208 : vector<8x128xf32>
    %210 = arith.negf %209 : vector<8x128xf32>
    %211 = math.exp %210 : vector<8x128xf32>
    %cst_77 = arith.constant 1.000000e+00 : f32
    %212 = vector.broadcast %cst_77 : f32 to vector<8x128xf32>
    %213 = arith.addf %212, %211 : vector<8x128xf32>
    %214 = arith.divf %212, %213 : vector<8x128xf32>
    %215 = vector.extract_strided_slice %214 {offsets = [0, 0], sizes = [8, 32], strides = [1, 1]} : vector<8x128xf32> to vector<8x32xf32>
    %216 = vector.extract_strided_slice %214 {offsets = [0, 32], sizes = [8, 32], strides = [1, 1]} : vector<8x128xf32> to vector<8x32xf32>
    %217 = vector.extract_strided_slice %214 {offsets = [0, 64], sizes = [8, 32], strides = [1, 1]} : vector<8x128xf32> to vector<8x32xf32>
    %cst_78 = arith.constant 2.000000e+00 : f32
    %218 = vector.broadcast %cst_78 : f32 to vector<8x32xf32>
    %219 = arith.mulf %218, %217 : vector<8x32xf32>
    %cst_79 = arith.constant 1.000000e+00 : f32
    %220 = vector.broadcast %cst_79 : f32 to vector<8x32xf32>
    %221 = arith.subf %219, %220 : vector<8x32xf32>
    %222 = vector.extract_strided_slice %214 {offsets = [0, 96], sizes = [8, 32], strides = [1, 1]} : vector<8x128xf32> to vector<8x32xf32>
    %223 = arith.mulf %216, %206 : vector<8x32xf32>
    %224 = arith.mulf %215, %221 : vector<8x32xf32>
    %225 = arith.addf %223, %224 : vector<8x32xf32>
    %226 = math.tanh %225 : vector<8x32xf32>
    %227 = arith.mulf %222, %226 : vector<8x32xf32>
    %c0_80 = arith.constant 0 : index
    %c0_81 = arith.constant 0 : index
    %228 = vector.load %arg11[%c0_80, %c0_81] : memref<64x32xf32, #tpu.memory_space<vmem>>, vector<8x32xf32>
    tpu.vector_store %arg11[%c0_80, %c0_81], %227 {strides = array<i32>} : memref<64x32xf32, #tpu.memory_space<vmem>>, vector<8x32xf32>,
    %229 = vector.extract_strided_slice %202 {offsets = [8, 0], sizes = [8, 128], strides = [1, 1]} : vector<64x128xf32> to vector<8x128xf32>
    %cst_82 = arith.constant dense<0.000000e+00> : vector<8x128xf32>
    %230 = tpu.matmul %227, %197, %cst_82 {dimension_numbers = #tpu.dot_dimension_numbers<[1], [0], [0], [1], [0, 0, 1, 1], [], []>} : vector<8x32xf32>, vector<32x128xf32>, vector<8x128xf32> -> vector<8x128xf32>
    %231 = arith.addf %229, %230 : vector<8x128xf32>
    %232 = arith.negf %231 : vector<8x128xf32>
    %233 = math.exp %232 : vector<8x128xf32>
    %cst_83 = arith.constant 1.000000e+00 : f32
    %234 = vector.broadcast %cst_83 : f32 to vector<8x128xf32>
    %235 = arith.addf %234, %233 : vector<8x128xf32>
    %236 = arith.divf %234, %235 : vector<8x128xf32>
    %237 = vector.extract_strided_slice %236 {offsets = [0, 0], sizes = [8, 32], strides = [1, 1]} : vector<8x128xf32> to vector<8x32xf32>
    %238 = vector.extract_strided_slice %236 {offsets = [0, 32], sizes = [8, 32], strides = [1, 1]} : vector<8x128xf32> to vector<8x32xf32>
    %239 = vector.extract_strided_slice %236 {offsets = [0, 64], sizes = [8, 32], strides = [1, 1]} : vector<8x128xf32> to vector<8x32xf32>
    %cst_84 = arith.constant 2.000000e+00 : f32
    %240 = vector.broadcast %cst_84 : f32 to vector<8x32xf32>
    %241 = arith.mulf %240, %239 : vector<8x32xf32>
    %cst_85 = arith.constant 1.000000e+00 : f32
    %242 = vector.broadcast %cst_85 : f32 to vector<8x32xf32>
    %243 = arith.subf %241, %242 : vector<8x32xf32>
    %244 = vector.extract_strided_slice %236 {offsets = [0, 96], sizes = [8, 32], strides = [1, 1]} : vector<8x128xf32> to vector<8x32xf32>
    %245 = arith.mulf %238, %225 : vector<8x32xf32>
    %246 = arith.mulf %237, %243 : vector<8x32xf32>
    %247 = arith.addf %245, %246 : vector<8x32xf32>
    %248 = math.tanh %247 : vector<8x32xf32>
    %249 = arith.mulf %244, %248 : vector<8x32xf32>
    %c8_86 = arith.constant 8 : index
    %c0_87 = arith.constant 0 : index
    %250 = vector.load %arg11[%c8_86, %c0_87] : memref<64x32xf32, #tpu.memory_space<vmem>>, vector<8x32xf32>
    tpu.vector_store %arg11[%c8_86, %c0_87], %249 {strides = array<i32>} : memref<64x32xf32, #tpu.memory_space<vmem>>, vector<8x32xf32>,
    %251 = vector.extract_strided_slice %202 {offsets = [16, 0], sizes = [8, 128], strides = [1, 1]} : vector<64x128xf32> to vector<8x128xf32>
    %cst_88 = arith.constant dense<0.000000e+00> : vector<8x128xf32>
    %252 = tpu.matmul %249, %197, %cst_88 {dimension_numbers = #tpu.dot_dimension_numbers<[1], [0], [0], [1], [0, 0, 1, 1], [], []>} : vector<8x32xf32>, vector<32x128xf32>, vector<8x128xf32> -> vector<8x128xf32>
    %253 = arith.addf %251, %252 : vector<8x128xf32>
    %254 = arith.negf %253 : vector<8x128xf32>
    %255 = math.exp %254 : vector<8x128xf32>
    %cst_89 = arith.constant 1.000000e+00 : f32
    %256 = vector.broadcast %cst_89 : f32 to vector<8x128xf32>
    %257 = arith.addf %256, %255 : vector<8x128xf32>
    %258 = arith.divf %256, %257 : vector<8x128xf32>
    %259 = vector.extract_strided_slice %258 {offsets = [0, 0], sizes = [8, 32], strides = [1, 1]} : vector<8x128xf32> to vector<8x32xf32>
    %260 = vector.extract_strided_slice %258 {offsets = [0, 32], sizes = [8, 32], strides = [1, 1]} : vector<8x128xf32> to vector<8x32xf32>
    %261 = vector.extract_strided_slice %258 {offsets = [0, 64], sizes = [8, 32], strides = [1, 1]} : vector<8x128xf32> to vector<8x32xf32>
    %cst_90 = arith.constant 2.000000e+00 : f32
    %262 = vector.broadcast %cst_90 : f32 to vector<8x32xf32>
    %263 = arith.mulf %262, %261 : vector<8x32xf32>
    %cst_91 = arith.constant 1.000000e+00 : f32
    %264 = vector.broadcast %cst_91 : f32 to vector<8x32xf32>
    %265 = arith.subf %263, %264 : vector<8x32xf32>
    %266 = vector.extract_strided_slice %258 {offsets = [0, 96], sizes = [8, 32], strides = [1, 1]} : vector<8x128xf32> to vector<8x32xf32>
    %267 = arith.mulf %260, %247 : vector<8x32xf32>
    %268 = arith.mulf %259, %265 : vector<8x32xf32>
    %269 = arith.addf %267, %268 : vector<8x32xf32>
    %270 = math.tanh %269 : vector<8x32xf32>
    %271 = arith.mulf %266, %270 : vector<8x32xf32>
    %c16_92 = arith.constant 16 : index
    %c0_93 = arith.constant 0 : index
    %272 = vector.load %arg11[%c16_92, %c0_93] : memref<64x32xf32, #tpu.memory_space<vmem>>, vector<8x32xf32>
    tpu.vector_store %arg11[%c16_92, %c0_93], %271 {strides = array<i32>} : memref<64x32xf32, #tpu.memory_space<vmem>>, vector<8x32xf32>,
    %273 = vector.extract_strided_slice %202 {offsets = [24, 0], sizes = [8, 128], strides = [1, 1]} : vector<64x128xf32> to vector<8x128xf32>
    %cst_94 = arith.constant dense<0.000000e+00> : vector<8x128xf32>
    %274 = tpu.matmul %271, %197, %cst_94 {dimension_numbers = #tpu.dot_dimension_numbers<[1], [0], [0], [1], [0, 0, 1, 1], [], []>} : vector<8x32xf32>, vector<32x128xf32>, vector<8x128xf32> -> vector<8x128xf32>
    %275 = arith.addf %273, %274 : vector<8x128xf32>
    %276 = arith.negf %275 : vector<8x128xf32>
    %277 = math.exp %276 : vector<8x128xf32>
    %cst_95 = arith.constant 1.000000e+00 : f32
    %278 = vector.broadcast %cst_95 : f32 to vector<8x128xf32>
    %279 = arith.addf %278, %277 : vector<8x128xf32>
    %280 = arith.divf %278, %279 : vector<8x128xf32>
    %281 = vector.extract_strided_slice %280 {offsets = [0, 0], sizes = [8, 32], strides = [1, 1]} : vector<8x128xf32> to vector<8x32xf32>
    %282 = vector.extract_strided_slice %280 {offsets = [0, 32], sizes = [8, 32], strides = [1, 1]} : vector<8x128xf32> to vector<8x32xf32>
    %283 = vector.extract_strided_slice %280 {offsets = [0, 64], sizes = [8, 32], strides = [1, 1]} : vector<8x128xf32> to vector<8x32xf32>
    %cst_96 = arith.constant 2.000000e+00 : f32
    %284 = vector.broadcast %cst_96 : f32 to vector<8x32xf32>
    %285 = arith.mulf %284, %283 : vector<8x32xf32>
    %cst_97 = arith.constant 1.000000e+00 : f32
    %286 = vector.broadcast %cst_97 : f32 to vector<8x32xf32>
    %287 = arith.subf %285, %286 : vector<8x32xf32>
    %288 = vector.extract_strided_slice %280 {offsets = [0, 96], sizes = [8, 32], strides = [1, 1]} : vector<8x128xf32> to vector<8x32xf32>
    %289 = arith.mulf %282, %269 : vector<8x32xf32>
    %290 = arith.mulf %281, %287 : vector<8x32xf32>
    %291 = arith.addf %289, %290 : vector<8x32xf32>
    %292 = math.tanh %291 : vector<8x32xf32>
    %293 = arith.mulf %288, %292 : vector<8x32xf32>
    %c24_98 = arith.constant 24 : index
    %c0_99 = arith.constant 0 : index
    %294 = vector.load %arg11[%c24_98, %c0_99] : memref<64x32xf32, #tpu.memory_space<vmem>>, vector<8x32xf32>
    tpu.vector_store %arg11[%c24_98, %c0_99], %293 {strides = array<i32>} : memref<64x32xf32, #tpu.memory_space<vmem>>, vector<8x32xf32>,
    %295 = vector.extract_strided_slice %202 {offsets = [32, 0], sizes = [8, 128], strides = [1, 1]} : vector<64x128xf32> to vector<8x128xf32>
    %cst_100 = arith.constant dense<0.000000e+00> : vector<8x128xf32>
    %296 = tpu.matmul %293, %197, %cst_100 {dimension_numbers = #tpu.dot_dimension_numbers<[1], [0], [0], [1], [0, 0, 1, 1], [], []>} : vector<8x32xf32>, vector<32x128xf32>, vector<8x128xf32> -> vector<8x128xf32>
    %297 = arith.addf %295, %296 : vector<8x128xf32>
    %298 = arith.negf %297 : vector<8x128xf32>
    %299 = math.exp %298 : vector<8x128xf32>
    %cst_101 = arith.constant 1.000000e+00 : f32
    %300 = vector.broadcast %cst_101 : f32 to vector<8x128xf32>
    %301 = arith.addf %300, %299 : vector<8x128xf32>
    %302 = arith.divf %300, %301 : vector<8x128xf32>
    %303 = vector.extract_strided_slice %302 {offsets = [0, 0], sizes = [8, 32], strides = [1, 1]} : vector<8x128xf32> to vector<8x32xf32>
    %304 = vector.extract_strided_slice %302 {offsets = [0, 32], sizes = [8, 32], strides = [1, 1]} : vector<8x128xf32> to vector<8x32xf32>
    %305 = vector.extract_strided_slice %302 {offsets = [0, 64], sizes = [8, 32], strides = [1, 1]} : vector<8x128xf32> to vector<8x32xf32>
    %cst_102 = arith.constant 2.000000e+00 : f32
    %306 = vector.broadcast %cst_102 : f32 to vector<8x32xf32>
    %307 = arith.mulf %306, %305 : vector<8x32xf32>
    %cst_103 = arith.constant 1.000000e+00 : f32
    %308 = vector.broadcast %cst_103 : f32 to vector<8x32xf32>
    %309 = arith.subf %307, %308 : vector<8x32xf32>
    %310 = vector.extract_strided_slice %302 {offsets = [0, 96], sizes = [8, 32], strides = [1, 1]} : vector<8x128xf32> to vector<8x32xf32>
    %311 = arith.mulf %304, %291 : vector<8x32xf32>
    %312 = arith.mulf %303, %309 : vector<8x32xf32>
    %313 = arith.addf %311, %312 : vector<8x32xf32>
    %314 = math.tanh %313 : vector<8x32xf32>
    %315 = arith.mulf %310, %314 : vector<8x32xf32>
    %c32_104 = arith.constant 32 : index
    %c0_105 = arith.constant 0 : index
    %316 = vector.load %arg11[%c32_104, %c0_105] : memref<64x32xf32, #tpu.memory_space<vmem>>, vector<8x32xf32>
    tpu.vector_store %arg11[%c32_104, %c0_105], %315 {strides = array<i32>} : memref<64x32xf32, #tpu.memory_space<vmem>>, vector<8x32xf32>,
    %317 = vector.extract_strided_slice %202 {offsets = [40, 0], sizes = [8, 128], strides = [1, 1]} : vector<64x128xf32> to vector<8x128xf32>
    %cst_106 = arith.constant dense<0.000000e+00> : vector<8x128xf32>
    %318 = tpu.matmul %315, %197, %cst_106 {dimension_numbers = #tpu.dot_dimension_numbers<[1], [0], [0], [1], [0, 0, 1, 1], [], []>} : vector<8x32xf32>, vector<32x128xf32>, vector<8x128xf32> -> vector<8x128xf32>
    %319 = arith.addf %317, %318 : vector<8x128xf32>
    %320 = arith.negf %319 : vector<8x128xf32>
    %321 = math.exp %320 : vector<8x128xf32>
    %cst_107 = arith.constant 1.000000e+00 : f32
    %322 = vector.broadcast %cst_107 : f32 to vector<8x128xf32>
    %323 = arith.addf %322, %321 : vector<8x128xf32>
    %324 = arith.divf %322, %323 : vector<8x128xf32>
    %325 = vector.extract_strided_slice %324 {offsets = [0, 0], sizes = [8, 32], strides = [1, 1]} : vector<8x128xf32> to vector<8x32xf32>
    %326 = vector.extract_strided_slice %324 {offsets = [0, 32], sizes = [8, 32], strides = [1, 1]} : vector<8x128xf32> to vector<8x32xf32>
    %327 = vector.extract_strided_slice %324 {offsets = [0, 64], sizes = [8, 32], strides = [1, 1]} : vector<8x128xf32> to vector<8x32xf32>
    %cst_108 = arith.constant 2.000000e+00 : f32
    %328 = vector.broadcast %cst_108 : f32 to vector<8x32xf32>
    %329 = arith.mulf %328, %327 : vector<8x32xf32>
    %cst_109 = arith.constant 1.000000e+00 : f32
    %330 = vector.broadcast %cst_109 : f32 to vector<8x32xf32>
    %331 = arith.subf %329, %330 : vector<8x32xf32>
    %332 = vector.extract_strided_slice %324 {offsets = [0, 96], sizes = [8, 32], strides = [1, 1]} : vector<8x128xf32> to vector<8x32xf32>
    %333 = arith.mulf %326, %313 : vector<8x32xf32>
    %334 = arith.mulf %325, %331 : vector<8x32xf32>
    %335 = arith.addf %333, %334 : vector<8x32xf32>
    %336 = math.tanh %335 : vector<8x32xf32>
    %337 = arith.mulf %332, %336 : vector<8x32xf32>
    %c40_110 = arith.constant 40 : index
    %c0_111 = arith.constant 0 : index
    %338 = vector.load %arg11[%c40_110, %c0_111] : memref<64x32xf32, #tpu.memory_space<vmem>>, vector<8x32xf32>
    tpu.vector_store %arg11[%c40_110, %c0_111], %337 {strides = array<i32>} : memref<64x32xf32, #tpu.memory_space<vmem>>, vector<8x32xf32>,
    %339 = vector.extract_strided_slice %202 {offsets = [48, 0], sizes = [8, 128], strides = [1, 1]} : vector<64x128xf32> to vector<8x128xf32>
    %cst_112 = arith.constant dense<0.000000e+00> : vector<8x128xf32>
    %340 = tpu.matmul %337, %197, %cst_112 {dimension_numbers = #tpu.dot_dimension_numbers<[1], [0], [0], [1], [0, 0, 1, 1], [], []>} : vector<8x32xf32>, vector<32x128xf32>, vector<8x128xf32> -> vector<8x128xf32>
    %341 = arith.addf %339, %340 : vector<8x128xf32>
    %342 = arith.negf %341 : vector<8x128xf32>
    %343 = math.exp %342 : vector<8x128xf32>
    %cst_113 = arith.constant 1.000000e+00 : f32
    %344 = vector.broadcast %cst_113 : f32 to vector<8x128xf32>
    %345 = arith.addf %344, %343 : vector<8x128xf32>
    %346 = arith.divf %344, %345 : vector<8x128xf32>
    %347 = vector.extract_strided_slice %346 {offsets = [0, 0], sizes = [8, 32], strides = [1, 1]} : vector<8x128xf32> to vector<8x32xf32>
    %348 = vector.extract_strided_slice %346 {offsets = [0, 32], sizes = [8, 32], strides = [1, 1]} : vector<8x128xf32> to vector<8x32xf32>
    %349 = vector.extract_strided_slice %346 {offsets = [0, 64], sizes = [8, 32], strides = [1, 1]} : vector<8x128xf32> to vector<8x32xf32>
    %cst_114 = arith.constant 2.000000e+00 : f32
    %350 = vector.broadcast %cst_114 : f32 to vector<8x32xf32>
    %351 = arith.mulf %350, %349 : vector<8x32xf32>
    %cst_115 = arith.constant 1.000000e+00 : f32
    %352 = vector.broadcast %cst_115 : f32 to vector<8x32xf32>
    %353 = arith.subf %351, %352 : vector<8x32xf32>
    %354 = vector.extract_strided_slice %346 {offsets = [0, 96], sizes = [8, 32], strides = [1, 1]} : vector<8x128xf32> to vector<8x32xf32>
    %355 = arith.mulf %348, %335 : vector<8x32xf32>
    %356 = arith.mulf %347, %353 : vector<8x32xf32>
    %357 = arith.addf %355, %356 : vector<8x32xf32>
    %358 = math.tanh %357 : vector<8x32xf32>
    %359 = arith.mulf %354, %358 : vector<8x32xf32>
    %c48_116 = arith.constant 48 : index
    %c0_117 = arith.constant 0 : index
    %360 = vector.load %arg11[%c48_116, %c0_117] : memref<64x32xf32, #tpu.memory_space<vmem>>, vector<8x32xf32>
    tpu.vector_store %arg11[%c48_116, %c0_117], %359 {strides = array<i32>} : memref<64x32xf32, #tpu.memory_space<vmem>>, vector<8x32xf32>,
    %361 = vector.extract_strided_slice %202 {offsets = [56, 0], sizes = [8, 128], strides = [1, 1]} : vector<64x128xf32> to vector<8x128xf32>
    %cst_118 = arith.constant dense<0.000000e+00> : vector<8x128xf32>
    %362 = tpu.matmul %359, %197, %cst_118 {dimension_numbers = #tpu.dot_dimension_numbers<[1], [0], [0], [1], [0, 0, 1, 1], [], []>} : vector<8x32xf32>, vector<32x128xf32>, vector<8x128xf32> -> vector<8x128xf32>
    %363 = arith.addf %361, %362 : vector<8x128xf32>
    %364 = arith.negf %363 : vector<8x128xf32>
    %365 = math.exp %364 : vector<8x128xf32>
    %cst_119 = arith.constant 1.000000e+00 : f32
    %366 = vector.broadcast %cst_119 : f32 to vector<8x128xf32>
    %367 = arith.addf %366, %365 : vector<8x128xf32>
    %368 = arith.divf %366, %367 : vector<8x128xf32>
    %369 = vector.extract_strided_slice %368 {offsets = [0, 0], sizes = [8, 32], strides = [1, 1]} : vector<8x128xf32> to vector<8x32xf32>
    %370 = vector.extract_strided_slice %368 {offsets = [0, 32], sizes = [8, 32], strides = [1, 1]} : vector<8x128xf32> to vector<8x32xf32>
    %371 = vector.extract_strided_slice %368 {offsets = [0, 64], sizes = [8, 32], strides = [1, 1]} : vector<8x128xf32> to vector<8x32xf32>
    %cst_120 = arith.constant 2.000000e+00 : f32
    %372 = vector.broadcast %cst_120 : f32 to vector<8x32xf32>
    %373 = arith.mulf %372, %371 : vector<8x32xf32>
    %cst_121 = arith.constant 1.000000e+00 : f32
    %374 = vector.broadcast %cst_121 : f32 to vector<8x32xf32>
    %375 = arith.subf %373, %374 : vector<8x32xf32>
    %376 = vector.extract_strided_slice %368 {offsets = [0, 96], sizes = [8, 32], strides = [1, 1]} : vector<8x128xf32> to vector<8x32xf32>
    %377 = arith.mulf %370, %357 : vector<8x32xf32>
    %378 = arith.mulf %369, %375 : vector<8x32xf32>
    %379 = arith.addf %377, %378 : vector<8x32xf32>
    %380 = math.tanh %379 : vector<8x32xf32>
    %381 = arith.mulf %376, %380 : vector<8x32xf32>
    %c56_122 = arith.constant 56 : index
    %c0_123 = arith.constant 0 : index
    %382 = vector.load %arg11[%c56_122, %c0_123] : memref<64x32xf32, #tpu.memory_space<vmem>>, vector<8x32xf32>
    tpu.vector_store %arg11[%c56_122, %c0_123], %381 {strides = array<i32>} : memref<64x32xf32, #tpu.memory_space<vmem>>, vector<8x32xf32>,
    %383 = tpu.concatenate %381, %379 in 1 : vector<8x32xf32>, vector<8x32xf32> -> vector<8x64xf32>
    %c1_124 = arith.constant 1 : index
    %c0_125 = arith.constant 0 : index
    %c0_126 = arith.constant 0 : index
    %384 = vector.load %arg10[%c1_124, %c0_125, %c0_126] : memref<2x8x64xf32, #tpu.memory_space<vmem>>, vector<1x8x64xf32>
    %385 = vector.shape_cast %384 : vector<1x8x64xf32> to vector<8x64xf32>
    %386 = vector.shape_cast %383 : vector<8x64xf32> to vector<1x8x64xf32>
    tpu.vector_store %arg10[%c1_124, %c0_125, %c0_126], %386 {strides = array<i32>} : memref<2x8x64xf32, #tpu.memory_space<vmem>>, vector<1x8x64xf32>,
    %c32_127 = arith.constant 32 : index
    %c0_128 = arith.constant 0 : index
    %387 = vector.load %arg11[%c32_127, %c0_128] : memref<64x32xf32, #tpu.memory_space<vmem>>, vector<32x32xf32>
    %c0_129 = arith.constant 0 : index
    %c0_130 = arith.constant 0 : index
    %388 = vector.load %arg7[%c0_129, %c0_130] : memref<32x128xf32, #tpu.memory_space<vmem>>, vector<32x128xf32>
    %cst_131 = arith.constant dense<0.000000e+00> : vector<32x128xf32>
    %389 = tpu.matmul %387, %388, %cst_131 {dimension_numbers = #tpu.dot_dimension_numbers<[1], [0], [0], [1], [0, 0, 1, 1], [], []>} : vector<32x32xf32>, vector<32x128xf32>, vector<32x128xf32> -> vector<32x128xf32>
    %c0_132 = arith.constant 0 : index
    %c0_133 = arith.constant 0 : index
    %390 = vector.load %arg8[%c0_132, %c0_133] : memref<1x128xf32, #tpu.memory_space<vmem>>, vector<1x128xf32>
    %391 = vector.broadcast %390 : vector<1x128xf32> to vector<32x128xf32>
    %392 = arith.addf %389, %391 : vector<32x128xf32>
    %c0_134 = arith.constant 0 : index
    %c0_135 = arith.constant 0 : index
    %393 = vector.load %arg9[%c0_134, %c0_135] : memref<32x128xf32, #tpu.memory_space<vmem>>, vector<32x128xf32>
    tpu.vector_store %arg9[%c0_134, %c0_135], %392 {strides = array<i32>} : memref<32x128xf32, #tpu.memory_space<vmem>>, vector<32x128xf32>,
    return
  }
}

</mosaic_0001>

<llo_original>
// kernel: tpu_custom_call.1
$region0: #{tpu_custom_call.1}
  #allocation0 [shape = 'u32[]', space=smem, size = 0x4, offset = 0x4, fixed_abs, tag = 'smem constant byte address 0x4 - core index']
  #allocation1 [shape = 'u32[144,128]{1,0:T(1,128)}', space=vmem, size = 0x12000, scoped, tag = 'internal scratch']
  #allocation2 [shape = 'f32[64,32]{1,0:T(8,128)}', space=vmem, size = 0x8000, scoped, tag = 'scratch operand']
  %s0 = inlined_call_operand.vmem [shape: f32[64,7], index: 0, kind: input, shape index: {}]
  %s1 = inlined_call_operand.hbm [shape: f32[7,128], index: 1, kind: input, shape index: {}]
  %s2 = inlined_call_operand.hbm [shape: f32[1,32,128], index: 2, kind: input, shape index: {}]
  %s3 = inlined_call_operand.vmem [shape: f32[2,32,128], index: 3, kind: input, shape index: {}]
  %s4 = inlined_call_operand.vmem [shape: f32[2,1,128], index: 4, kind: input, shape index: {}]
  %s5 = inlined_call_operand.hbm [shape: f32[2,8,32], index: 5, kind: input, shape index: {}]
  %s6 = inlined_call_operand.hbm [shape: f32[2,8,32], index: 6, kind: input, shape index: {}]
  %s7 = inlined_call_operand.vmem [shape: f32[32,128], index: 7, kind: input, shape index: {}]
  %s8 = inlined_call_operand.vmem [shape: f32[1,128], index: 8, kind: input, shape index: {}]
  %s9 = inlined_call_operand.hbm [shape: f32[32,128], index: 9, kind: output, shape index: {0}]
  %s10 = inlined_call_operand.hbm [shape: f32[2,8,64], index: 10, kind: output, shape index: {1}]
  %11 = xla_tuple %s9, %s10
  %s12 = sld [smem:[#allocation0]]
  $region70: #{tpu_custom_call.1} parent=0
    _
  %s14 = ssub.s32 1, %s12
  %s15 = scalar_select 0, %s14, %s12
  $region1: #{tpu_custom_call.1} parent=0
    #allocation3 [shape = 'u8[4096]{0}', space=vmem, size = 0x1000, scoped, tag = 'input window, operand 1, single buffered']
    #allocation4 [shape = 's32[1]{0}', space=sflag, size = 0x4, scoped, tag = 'scoped memory for tpu_custom_call.1']
    #allocation5 [shape = 's32[1]{0}', space=sflag, size = 0x4, scoped, tag = 'scoped memory for tpu_custom_call.1']
    #allocation6 [shape = 'u8[16384]{0}', space=vmem, size = 0x4000, scoped, tag = 'input window, operand 2, single buffered']
    #allocation7 [shape = 's32[1]{0}', space=sflag, size = 0x4, scoped, tag = 'scoped memory for tpu_custom_call.1']
    #allocation8 [shape = 'u8[8192]{0}', space=vmem, size = 0x2000, scoped, tag = 'input window, operand 5, single buffered']
    #allocation9 [shape = 'u8[8192]{0}', space=vmem, size = 0x2000, scoped, tag = 'input window, operand 6, single buffered']
    #allocation10 [shape = 's32[1]{0}', space=sflag, size = 0x4, scoped, tag = 'scoped memory for tpu_custom_call.1']
    #allocation11 [shape = 'u8[16384]{0}', space=vmem, size = 0x4000, scoped, tag = 'output window, operand 0, single buffered']
    #allocation12 [shape = 'u8[8192]{0}', space=vmem, size = 0x2000, scoped, tag = 'output window, operand 1, single buffered']
    #allocation13 [shape = 's32[1]{0}', space=sflag, size = 0x4, scoped, tag = 'scoped memory for tpu_custom_call.1']
    %16 = vsyncpa [#allocation4], 0
    %17 = vsyncpa [#allocation7], 0
    %18 = vsyncpa [#allocation10], 0
    %19 = vsyncpa [#allocation5], 0
    %20 = vsyncpa [#allocation13], 0
    // Predicated region
    $region2: #{tpu_custom_call.1} parent=1 // pred_check
      _
    $region3: #{tpu_custom_call.1} parent=1 // pred_check_branch
      %22 = sbr.rel (0) target = $region5
    $region4: #{tpu_custom_call.1} parent=1 // pred_region
      _
    $region5: #{tpu_custom_call.1} parent=1 // pred_fallthru
      _
    // Predicated region
    $region6: #{tpu_custom_call.1} parent=1 // pred_check
      _
    $region7: #{tpu_custom_call.1} parent=1 // pred_check_branch
      %24 = sbr.rel (0) target = $region9
    $region8: #{tpu_custom_call.1} parent=1 // pred_region
      %s26 = ssub.s32 128, 128
      %27 = vsyncadd [#allocation4], %s26
      %s29 = sshll.u32 [#allocation3], 4
      %s30 = int_to_ptr.vmem [resolvable:$true] %s29
      %32 = dma.hbm_to_vmem [thread:$0]  %s1, 128, %s30, [#allocation4]
    $region9: #{tpu_custom_call.1} parent=1 // pred_fallthru
      _
    // Predicated region
    $region10: #{tpu_custom_call.1} parent=1 // pred_check
      _
    $region11: #{tpu_custom_call.1} parent=1 // pred_check_branch
      %34 = sbr.rel (0) target = $region13
    $region12: #{tpu_custom_call.1} parent=1 // pred_region
      %s36 = ssub.s32 512, 512
      %37 = vsyncadd [#allocation7], %s36
      %s38 = sshll.u32 [#allocation6], 4
      %s39 = int_to_ptr.vmem [resolvable:$true] %s38
      %44 = dma.hbm_to_vmem [thread:$0]  %s2, 512, %s39, [#allocation7], 128, 128, 8
    $region13: #{tpu_custom_call.1} parent=1 // pred_fallthru
      _
    // Predicated region
    $region14: #{tpu_custom_call.1} parent=1 // pred_check
      _
    $region15: #{tpu_custom_call.1} parent=1 // pred_check_branch
      %46 = sbr.rel (0) target = $region17
    $region16: #{tpu_custom_call.1} parent=1 // pred_region
      _
    $region17: #{tpu_custom_call.1} parent=1 // pred_fallthru
      _
    // Predicated region
    $region18: #{tpu_custom_call.1} parent=1 // pred_check
      _
    $region19: #{tpu_custom_call.1} parent=1 // pred_check_branch
      %48 = sbr.rel (0) target = $region21
    $region20: #{tpu_custom_call.1} parent=1 // pred_region
      _
    $region21: #{tpu_custom_call.1} parent=1 // pred_fallthru
      _
    // Predicated region
    $region22: #{tpu_custom_call.1} parent=1 // pred_check
      _
    $region23: #{tpu_custom_call.1} parent=1 // pred_check_branch
      %50 = sbr.rel (0) target = $region25
    $region24: #{tpu_custom_call.1} parent=1 // pred_region
      %s52 = ssub.s32 256, 256
      %53 = vsyncadd [#allocation7], %s52
      %s54 = sshll.u32 [#allocation8], 4
      %s55 = int_to_ptr.vmem [resolvable:$true] %s54
      %60 = dma.hbm_to_vmem [thread:$0]  %s5, 256, %s55, [#allocation7], 128, 128, 8
    $region25: #{tpu_custom_call.1} parent=1 // pred_fallthru
      _
    // Predicated region
    $region26: #{tpu_custom_call.1} parent=1 // pred_check
      _
    $region27: #{tpu_custom_call.1} parent=1 // pred_check_branch
      %62 = sbr.rel (0) target = $region29
    $region28: #{tpu_custom_call.1} parent=1 // pred_region
      %s64 = ssub.s32 256, 256
      %65 = vsyncadd [#allocation10], %s64
      %s66 = sshll.u32 [#allocation9], 4
      %s67 = int_to_ptr.vmem [resolvable:$true] %s66
      %72 = dma.hbm_to_vmem [thread:$0]  %s6, 256, %s67, [#allocation10], 128, 128, 8
    $region29: #{tpu_custom_call.1} parent=1 // pred_fallthru
      _
    // Predicated region
    $region30: #{tpu_custom_call.1} parent=1 // pred_check
      _
    $region31: #{tpu_custom_call.1} parent=1 // pred_check_branch
      %74 = sbr.rel (0) target = $region33
    $region32: #{tpu_custom_call.1} parent=1 // pred_region
      _
    $region33: #{tpu_custom_call.1} parent=1 // pred_fallthru
      _
    // Predicated region
    $region34: #{tpu_custom_call.1} parent=1 // pred_check
      _
    $region35: #{tpu_custom_call.1} parent=1 // pred_check_branch
      %76 = sbr.rel (0) target = $region37
    $region36: #{tpu_custom_call.1} parent=1 // pred_region
      _
    $region37: #{tpu_custom_call.1} parent=1 // pred_fallthru
      _
    // Predicated region
    $region38: #{tpu_custom_call.1} parent=1 // pred_check
      _
    $region39: #{tpu_custom_call.1} parent=1 // pred_check_branch
      %78 = sbr.rel (0) target = $region41
    $region40: #{tpu_custom_call.1} parent=1 // pred_region
      %79 = dma.done [#allocation4], 128
    $region41: #{tpu_custom_call.1} parent=1 // pred_fallthru
      _
    // Predicated region
    $region42: #{tpu_custom_call.1} parent=1 // pred_check
      _
    $region43: #{tpu_custom_call.1} parent=1 // pred_check_branch
      %81 = sbr.rel (0) target = $region45
    $region44: #{tpu_custom_call.1} parent=1 // pred_region
      %82 = dma.done [#allocation7], 512
    $region45: #{tpu_custom_call.1} parent=1 // pred_fallthru
      _
    // Predicated region
    $region46: #{tpu_custom_call.1} parent=1 // pred_check
      _
    $region47: #{tpu_custom_call.1} parent=1 // pred_check_branch
      %84 = sbr.rel (0) target = $region49
    $region48: #{tpu_custom_call.1} parent=1 // pred_region
      %85 = dma.done [#allocation7], 256
    $region49: #{tpu_custom_call.1} parent=1 // pred_fallthru
      _
    // Predicated region
    $region50: #{tpu_custom_call.1} parent=1 // pred_check
      _
    $region51: #{tpu_custom_call.1} parent=1 // pred_check_branch
      %87 = sbr.rel (0) target = $region53
    $region52: #{tpu_custom_call.1} parent=1 // pred_region
      %88 = dma.done [#allocation10], 256
    $region53: #{tpu_custom_call.1} parent=1 // pred_fallthru
      _
    %v89 = vld [vmem:[%s0] sm:$0xff]
    %v90 = vld [vmem:[%s0 + $0x8] sm:$0xff]
    %v91 = vld [vmem:[%s0 + $0x10] sm:$0xff]
    %v92 = vld [vmem:[%s0 + $0x18] sm:$0xff]
    %v93 = vld [vmem:[%s0 + $0x20] sm:$0xff]
    %v94 = vld [vmem:[%s0 + $0x28] sm:$0xff]
    %v95 = vld [vmem:[%s0 + $0x30] sm:$0xff]
    %v96 = vld [vmem:[%s0 + $0x38] sm:$0xff]
    %v97 = vld [vmem:[#allocation3] sm:$0x7f]
    %v98 = vld [vmem:[%s3] sm:$0xff]
    %v99 = vld [vmem:[%s3 + $0x8] sm:$0xff]
    %v100 = vld [vmem:[%s3 + $0x10] sm:$0xff]
    %v101 = vld [vmem:[%s3 + $0x18] sm:$0xff]
    %v102 = vld [vmem:[%s4] sm:$0x1]
    %v104 = vlaneseq
    %v105 = vshrl.u32 %v104, 7
    %v106 = vsub.s32 0, %v105
    %v107 = vrot.slane %v102, %v106
    %vm109 = vcmask 56320
    %v111 = vsel %vm109, %v89, 0
    %v114 = vsel %vm109, %v90, 0
    %v117 = vsel %vm109, %v91, 0
    %v120 = vsel %vm109, %v92, 0
    %v123 = vsel %vm109, %v93, 0
    %v126 = vsel %vm109, %v94, 0
    %v129 = vsel %vm109, %v95, 0
    %v132 = vsel %vm109, %v96, 0
    %vm134 = vcmask 1046528
    %v136 = vsel %vm134, %v97, 0
    %138 = vmatprep.subr.mxu0 0.0
    %139 = vmatpush1.msra.mxu0 %v136
    %140 = vmatprep.subr.mxu0 0.0
    %141 = vmatpush1.msra.mxu0 0.0
    %142 = vmatprep.subr.mxu0 0.0
    %143 = vmatpush1.msra.mxu0 0.0
    %144 = vmatprep.subr.mxu0 0.0
    %145 = vmatpush1.msra.mxu0 0.0
    %146 = vmatprep.subr.mxu0 0.0
    %147 = vmatpush1.msra.mxu0 0.0
    %148 = vmatprep.subr.mxu0 0.0
    %149 = vmatpush1.msra.mxu0 0.0
    %150 = vmatprep.subr.mxu0 0.0
    %151 = vmatpush1.msra.mxu0 0.0
    %152 = vmatprep.subr.mxu0 0.0
    %153 = vmatpush1.msra.mxu0 0.0
    %154 = vmatprep.subr.mxu0 0.0
    %155 = vmatpush1.msra.mxu0 0.0
    %156 = vmatprep.subr.mxu0 0.0
    %157 = vmatpush1.msra.mxu0 0.0
    %158 = vmatprep.subr.mxu0 0.0
    %159 = vmatpush1.msra.mxu0 0.0
    %160 = vmatprep.subr.mxu0 0.0
    %161 = vmatpush1.msra.mxu0 0.0
    %162 = vmatprep.subr.mxu0 0.0
    %163 = vmatpush1.msra.mxu0 0.0
    %164 = vmatprep.subr.mxu0 0.0
    %165 = vmatpush1.msra.mxu0 0.0
    %166 = vmatprep.subr.mxu0 0.0
    %167 = vmatpush1.msra.mxu0 0.0
    %168 = vmatprep.subr.mxu0 0.0
    %169 = vmatpush1.msra.mxu0 0.0
    %170 = vmatprep.subr.mxu0 0.0
    %171 = vmatpush1.msra.mxu0 0.0
    %172 = vmatprep.subr.mxu0 0.0
    %173 = vmatpush1.msra.mxu0 0.0
    %174 = vmatprep.subr.mxu0 0.0
    %175 = vmatpush1.msra.mxu0 0.0
    %176 = vmatprep.subr.mxu0 0.0
    %177 = vmatpush1.msra.mxu0 0.0
    %178 = vmatprep.subr.mxu0 0.0
    %179 = vmatpush1.msra.mxu0 0.0
    %180 = vmatprep.subr.mxu0 0.0
    %181 = vmatpush1.msra.mxu0 0.0
    %182 = vmatprep.subr.mxu0 0.0
    %183 = vmatpush1.msra.mxu0 0.0
    %184 = vmatprep.subr.mxu0 0.0
    %185 = vmatpush1.msra.mxu0 0.0
    %186 = vmatprep.subr.mxu0 0.0
    %187 = vmatpush1.msra.mxu0 0.0
    %188 = vmatprep.subr.mxu0 0.0
    %189 = vmatpush1.msra.mxu0 0.0
    %190 = vmatprep.subr.mxu0 0.0
    %191 = vmatpush1.msra.mxu0 0.0
    %192 = vmatprep.subr.mxu0 0.0
    %193 = vmatpush1.msra.mxu0 0.0
    %194 = vmatprep.subr.mxu0 0.0
    %195 = vmatpush1.msra.mxu0 0.0
    %196 = vmatprep.subr.mxu0 0.0
    %197 = vmatpush1.msra.mxu0 0.0
    %198 = vmatprep.subr.mxu0 0.0
    %199 = vmatpush1.msra.mxu0 0.0
    %200 = vmatprep.subr.mxu0 0.0
    %201 = vmatpush1.msra.mxu0 0.0
    %202 = vmatprep.mubr.f32.mxu0 0.0
    %203 = vmatmul.mubr.f32.gmra.mrb[0].mxu0 %v111
    %v204 = vpop.f32.mrb[0].mxu0
    %v205 = vadd.f32 %v107, %v204
    %v206 = vpop.f32.mrb[0].mxu0
    %207 = vmatprep.mubr.f32.mxu0 0.0
    %208 = vmatmul.mubr.f32.gmra.mrb[0].mxu0 %v114
    %v209 = vpop.f32.mrb[0].mxu0
    %v210 = vadd.f32 %v107, %v209
    %v211 = vpop.f32.mrb[0].mxu0
    %212 = vmatprep.mubr.f32.mxu0 0.0
    %213 = vmatmul.mubr.f32.gmra.mrb[0].mxu0 %v117
    %v214 = vpop.f32.mrb[0].mxu0
    %v215 = vadd.f32 %v107, %v214
    %v216 = vpop.f32.mrb[0].mxu0
    %217 = vmatprep.mubr.f32.mxu0 0.0
    %218 = vmatmul.mubr.f32.gmra.mrb[0].mxu0 %v120
    %v219 = vpop.f32.mrb[0].mxu0
    %v220 = vadd.f32 %v107, %v219
    %v221 = vpop.f32.mrb[0].mxu0
    %222 = vmatprep.mubr.f32.mxu0 0.0
    %223 = vmatmul.mubr.f32.gmra.mrb[0].mxu0 %v123
    %v224 = vpop.f32.mrb[0].mxu0
    %v225 = vadd.f32 %v107, %v224
    %v226 = vpop.f32.mrb[0].mxu0
    %227 = vmatprep.mubr.f32.mxu0 0.0
    %228 = vmatmul.mubr.f32.gmra.mrb[0].mxu0 %v126
    %v229 = vpop.f32.mrb[0].mxu0
    %v230 = vadd.f32 %v107, %v229
    %v231 = vpop.f32.mrb[0].mxu0
    %232 = vmatprep.mubr.f32.mxu0 0.0
    %233 = vmatmul.mubr.f32.gmra.mrb[0].mxu0 %v129
    %v234 = vpop.f32.mrb[0].mxu0
    %v235 = vadd.f32 %v107, %v234
    %v236 = vpop.f32.mrb[0].mxu0
    %237 = vmatprep.mubr.f32.mxu0 0.0
    %238 = vmatmul.mubr.f32.gmra.mrb[0].mxu0 %v132
    %v239 = vpop.f32.mrb[0].mxu0
    %v240 = vadd.f32 %v107, %v239
    %v241 = vpop.f32.mrb[0].mxu0
    %242 = vdwg.mxu0
    %v243 = vld [vmem:[#allocation8] sm:$0xff]
    %v244 = vld [vmem:[#allocation9] sm:$0xff]
    %vm245 = vcmask 261120
    %v247 = vsel %vm245, %v243, 0
    %249 = vmatprep.subr.mxu0 0.0
    %250 = vmatpush1.msra.mxu0 %v98
    %251 = vmatprep.subr.mxu0 0.0
    %252 = vmatpush1.msra.mxu0 %v99
    %253 = vmatprep.subr.mxu0 0.0
    %254 = vmatpush1.msra.mxu0 %v100
    %255 = vmatprep.subr.mxu0 0.0
    %256 = vmatpush1.msra.mxu0 %v101
    %257 = vmatprep.subr.mxu0 0.0
    %258 = vmatpush1.msra.mxu0 0.0
    %259 = vmatprep.subr.mxu0 0.0
    %260 = vmatpush1.msra.mxu0 0.0
    %261 = vmatprep.subr.mxu0 0.0
    %262 = vmatpush1.msra.mxu0 0.0
    %263 = vmatprep.subr.mxu0 0.0
    %264 = vmatpush1.msra.mxu0 0.0
    %265 = vmatprep.subr.mxu0 0.0
    %266 = vmatpush1.msra.mxu0 0.0
    %267 = vmatprep.subr.mxu0 0.0
    %268 = vmatpush1.msra.mxu0 0.0
    %269 = vmatprep.subr.mxu0 0.0
    %270 = vmatpush1.msra.mxu0 0.0
    %271 = vmatprep.subr.mxu0 0.0
    %272 = vmatpush1.msra.mxu0 0.0
    %273 = vmatprep.subr.mxu0 0.0
    %274 = vmatpush1.msra.mxu0 0.0
    %275 = vmatprep.subr.mxu0 0.0
    %276 = vmatpush1.msra.mxu0 0.0
    %277 = vmatprep.subr.mxu0 0.0
    %278 = vmatpush1.msra.mxu0 0.0
    %279 = vmatprep.subr.mxu0 0.0
    %280 = vmatpush1.msra.mxu0 0.0
    %281 = vmatprep.subr.mxu0 0.0
    %282 = vmatpush1.msra.mxu0 0.0
    %283 = vmatprep.subr.mxu0 0.0
    %284 = vmatpush1.msra.mxu0 0.0
    %285 = vmatprep.subr.mxu0 0.0
    %286 = vmatpush1.msra.mxu0 0.0
    %287 = vmatprep.subr.mxu0 0.0
    %288 = vmatpush1.msra.mxu0 0.0
    %289 = vmatprep.subr.mxu0 0.0
    %290 = vmatpush1.msra.mxu0 0.0
    %291 = vmatprep.subr.mxu0 0.0
    %292 = vmatpush1.msra.mxu0 0.0
    %293 = vmatprep.subr.mxu0 0.0
    %294 = vmatpush1.msra.mxu0 0.0
    %295 = vmatprep.subr.mxu0 0.0
    %296 = vmatpush1.msra.mxu0 0.0
    %297 = vmatprep.subr.mxu0 0.0
    %298 = vmatpush1.msra.mxu0 0.0
    %299 = vmatprep.subr.mxu0 0.0
    %300 = vmatpush1.msra.mxu0 0.0
    %301 = vmatprep.subr.mxu0 0.0
    %302 = vmatpush1.msra.mxu0 0.0
    %303 = vmatprep.subr.mxu0 0.0
    %304 = vmatpush1.msra.mxu0 0.0
    %305 = vmatprep.subr.mxu0 0.0
    %306 = vmatpush1.msra.mxu0 0.0
    %307 = vmatprep.subr.mxu0 0.0
    %308 = vmatpush1.msra.mxu0 0.0
    %309 = vmatprep.subr.mxu0 0.0
    %310 = vmatpush1.msra.mxu0 0.0
    %311 = vmatprep.subr.mxu0 0.0
    %312 = vmatpush1.msra.mxu0 0.0
    %313 = vmatprep.mubr.f32.mxu0 0.0
    %314 = vmatmul.mubr.f32.gmra.mrb[0].mxu0 %v247
    %v315 = vpop.f32.mrb[0].mxu0
    %v316 = vadd.f32 0.0, %v315
    %v317 = vpop.f32.mrb[0].mxu0
    %318 = vdwg.mxu0
    %v319 = vadd.f32 %v205, %v316
    %v320 = vxor.u32 %v319, 2147483648
    %v321 = vmul.f32 %v320, 1.442695
    %v322 = vpow.pop %v321
    %v323 = vadd.f32 %v322, 1.0
    %v324 = vrcp.pop %v323
    %v325 = vmul.f32 1.0, %v324
    %v326 = vmul.f32 %v325, 2.0
    %v327 = vsub.f32 %v326, 1.0
    %329 = vrot.lane.b32.xlu0 %v244, 32
    %v330 = vpop.permute.xlu0 %329
    %v332 = vmul.f32 %v325, %v330
    %334 = vrot.lane.b32.xlu0 %v327, 64
    %v335 = vpop.permute.xlu0 %334
    %v337 = vmul.f32 %v325, %v335
    %339 = vrot.lane.b32.xlu0 %v337, 32
    %v340 = vpop.permute.xlu0 %339
    %v342 = vadd.f32 %v332, %v340
    %v343 = vtanh.pop %v342
    %345 = vrot.lane.b32.xlu0 %v343, 64
    %v346 = vpop.permute.xlu0 %345
    %v348 = vmul.f32 %v325, %v346
    %350 = vrot.lane.b32.xlu0 %v348, 32
    %v351 = vpop.permute.xlu0 %350
    %353 = vst.msk [vmem:[#allocation2] sm:$0xff] %vm245, %v351
    %v354 = vsel %vm245, %v351, 0
    %356 = vmatprep.subr.mxu0 0.0
    %357 = vmatpush1.msra.mxu0 %v98
    %358 = vmatprep.subr.mxu0 0.0
    %359 = vmatpush1.msra.mxu0 %v99
    %360 = vmatprep.subr.mxu0 0.0
    %361 = vmatpush1.msra.mxu0 %v100
    %362 = vmatprep.subr.mxu0 0.0
    %363 = vmatpush1.msra.mxu0 %v101
    %364 = vmatprep.subr.mxu0 0.0
    %365 = vmatpush1.msra.mxu0 0.0
    %366 = vmatprep.subr.mxu0 0.0
    %367 = vmatpush1.msra.mxu0 0.0
    %368 = vmatprep.subr.mxu0 0.0
    %369 = vmatpush1.msra.mxu0 0.0
    %370 = vmatprep.subr.mxu0 0.0
    %371 = vmatpush1.msra.mxu0 0.0
    %372 = vmatprep.subr.mxu0 0.0
    %373 = vmatpush1.msra.mxu0 0.0
    %374 = vmatprep.subr.mxu0 0.0
    %375 = vmatpush1.msra.mxu0 0.0
    %376 = vmatprep.subr.mxu0 0.0
    %377 = vmatpush1.msra.mxu0 0.0
    %378 = vmatprep.subr.mxu0 0.0
    %379 = vmatpush1.msra.mxu0 0.0
    %380 = vmatprep.subr.mxu0 0.0
    %381 = vmatpush1.msra.mxu0 0.0
    %382 = vmatprep.subr.mxu0 0.0
    %383 = vmatpush1.msra.mxu0 0.0
    %384 = vmatprep.subr.mxu0 0.0
    %385 = vmatpush1.msra.mxu0 0.0
    %386 = vmatprep.subr.mxu0 0.0
    %387 = vmatpush1.msra.mxu0 0.0
    %388 = vmatprep.subr.mxu0 0.0
    %389 = vmatpush1.msra.mxu0 0.0
    %390 = vmatprep.subr.mxu0 0.0
    %391 = vmatpush1.msra.mxu0 0.0
    %392 = vmatprep.subr.mxu0 0.0
    %393 = vmatpush1.msra.mxu0 0.0
    %394 = vmatprep.subr.mxu0 0.0
    %395 = vmatpush1.msra.mxu0 0.0
    %396 = vmatprep.subr.mxu0 0.0
    %397 = vmatpush1.msra.mxu0 0.0
    %398 = vmatprep.subr.mxu0 0.0
    %399 = vmatpush1.msra.mxu0 0.0
    %400 = vmatprep.subr.mxu0 0.0
    %401 = vmatpush1.msra.mxu0 0.0
    %402 = vmatprep.subr.mxu0 0.0
    %403 = vmatpush1.msra.mxu0 0.0
    %404 = vmatprep.subr.mxu0 0.0
    %405 = vmatpush1.msra.mxu0 0.0
    %406 = vmatprep.subr.mxu0 0.0
    %407 = vmatpush1.msra.mxu0 0.0
    %408 = vmatprep.subr.mxu0 0.0
    %409 = vmatpush1.msra.mxu0 0.0
    %410 = vmatprep.subr.mxu0 0.0
    %411 = vmatpush1.msra.mxu0 0.0
    %412 = vmatprep.subr.mxu0 0.0
    %413 = vmatpush1.msra.mxu0 0.0
    %414 = vmatprep.subr.mxu0 0.0
    %415 = vmatpush1.msra.mxu0 0.0
    %416 = vmatprep.subr.mxu0 0.0
    %417 = vmatpush1.msra.mxu0 0.0
    %418 = vmatprep.subr.mxu0 0.0
    %419 = vmatpush1.msra.mxu0 0.0
    %420 = vmatprep.mubr.f32.mxu0 0.0
    %421 = vmatmul.mubr.f32.gmra.mrb[0].mxu0 %v354
    %v422 = vpop.f32.mrb[0].mxu0
    %v423 = vadd.f32 0.0, %v422
    %v424 = vpop.f32.mrb[0].mxu0
    %425 = vdwg.mxu0
    %v426 = vadd.f32 %v210, %v423
    %v427 = vxor.u32 %v426, 2147483648
    %v428 = vmul.f32 %v427, 1.442695
    %v429 = vpow.pop %v428
    %v430 = vadd.f32 %v429, 1.0
    %v431 = vrcp.pop %v430
    %v432 = vmul.f32 1.0, %v431
    %v433 = vmul.f32 %v432, 2.0
    %v434 = vsub.f32 %v433, 1.0
    %v435 = vmul.f32 %v432, %v342
    %437 = vrot.lane.b32.xlu0 %v434, 64
    %v438 = vpop.permute.xlu0 %437
    %v440 = vmul.f32 %v432, %v438
    %442 = vrot.lane.b32.xlu0 %v440, 32
    %v443 = vpop.permute.xlu0 %442
    %v445 = vadd.f32 %v435, %v443
    %v446 = vtanh.pop %v445
    %448 = vrot.lane.b32.xlu0 %v446, 64
    %v449 = vpop.permute.xlu0 %448
    %v451 = vmul.f32 %v432, %v449
    %453 = vrot.lane.b32.xlu0 %v451, 32
    %v454 = vpop.permute.xlu0 %453
    %456 = vst.msk [vmem:[#allocation2 + $0x8] sm:$0xff] %vm245, %v454
    %v457 = vsel %vm245, %v454, 0
    %459 = vmatprep.subr.mxu0 0.0
    %460 = vmatpush1.msra.mxu0 %v98
    %461 = vmatprep.subr.mxu0 0.0
    %462 = vmatpush1.msra.mxu0 %v99
    %463 = vmatprep.subr.mxu0 0.0
    %464 = vmatpush1.msra.mxu0 %v100
    %465 = vmatprep.subr.mxu0 0.0
    %466 = vmatpush1.msra.mxu0 %v101
    %467 = vmatprep.subr.mxu0 0.0
    %468 = vmatpush1.msra.mxu0 0.0
    %469 = vmatprep.subr.mxu0 0.0
    %470 = vmatpush1.msra.mxu0 0.0
    %471 = vmatprep.subr.mxu0 0.0
    %472 = vmatpush1.msra.mxu0 0.0
    %473 = vmatprep.subr.mxu0 0.0
    %474 = vmatpush1.msra.mxu0 0.0
    %475 = vmatprep.subr.mxu0 0.0
    %476 = vmatpush1.msra.mxu0 0.0
    %477 = vmatprep.subr.mxu0 0.0
    %478 = vmatpush1.msra.mxu0 0.0
    %479 = vmatprep.subr.mxu0 0.0
    %480 = vmatpush1.msra.mxu0 0.0
    %481 = vmatprep.subr.mxu0 0.0
    %482 = vmatpush1.msra.mxu0 0.0
    %483 = vmatprep.subr.mxu0 0.0
    %484 = vmatpush1.msra.mxu0 0.0
    %485 = vmatprep.subr.mxu0 0.0
    %486 = vmatpush1.msra.mxu0 0.0
    %487 = vmatprep.subr.mxu0 0.0
    %488 = vmatpush1.msra.mxu0 0.0
    %489 = vmatprep.subr.mxu0 0.0
    %490 = vmatpush1.msra.mxu0 0.0
    %491 = vmatprep.subr.mxu0 0.0
    %492 = vmatpush1.msra.mxu0 0.0
    %493 = vmatprep.subr.mxu0 0.0
    %494 = vmatpush1.msra.mxu0 0.0
    %495 = vmatprep.subr.mxu0 0.0
    %496 = vmatpush1.msra.mxu0 0.0
    %497 = vmatprep.subr.mxu0 0.0
    %498 = vmatpush1.msra.mxu0 0.0
    %499 = vmatprep.subr.mxu0 0.0
    %500 = vmatpush1.msra.mxu0 0.0
    %501 = vmatprep.subr.mxu0 0.0
    %502 = vmatpush1.msra.mxu0 0.0
    %503 = vmatprep.subr.mxu0 0.0
    %504 = vmatpush1.msra.mxu0 0.0
    %505 = vmatprep.subr.mxu0 0.0
    %506 = vmatpush1.msra.mxu0 0.0
    %507 = vmatprep.subr.mxu0 0.0
    %508 = vmatpush1.msra.mxu0 0.0
    %509 = vmatprep.subr.mxu0 0.0
    %510 = vmatpush1.msra.mxu0 0.0
    %511 = vmatprep.subr.mxu0 0.0
    %512 = vmatpush1.msra.mxu0 0.0
    %513 = vmatprep.subr.mxu0 0.0
    %514 = vmatpush1.msra.mxu0 0.0
    %515 = vmatprep.subr.mxu0 0.0
    %516 = vmatpush1.msra.mxu0 0.0
    %517 = vmatprep.subr.mxu0 0.0
    %518 = vmatpush1.msra.mxu0 0.0
    %519 = vmatprep.subr.mxu0 0.0
    %520 = vmatpush1.msra.mxu0 0.0
    %521 = vmatprep.subr.mxu0 0.0
    %522 = vmatpush1.msra.mxu0 0.0
    %523 = vmatprep.mubr.f32.mxu0 0.0
    %524 = vmatmul.mubr.f32.gmra.mrb[0].mxu0 %v457
    %v525 = vpop.f32.mrb[0].mxu0
    %v526 = vadd.f32 0.0, %v525
    %v527 = vpop.f32.mrb[0].mxu0
    %528 = vdwg.mxu0
    %v529 = vadd.f32 %v215, %v526
    %v530 = vxor.u32 %v529, 2147483648
    %v531 = vmul.f32 %v530, 1.442695
    %v532 = vpow.pop %v531
    %v533 = vadd.f32 %v532, 1.0
    %v534 = vrcp.pop %v533
    %v535 = vmul.f32 1.0, %v534
    %v536 = vmul.f32 %v535, 2.0
    %v537 = vsub.f32 %v536, 1.0
    %v538 = vmul.f32 %v535, %v445
    %540 = vrot.lane.b32.xlu0 %v537, 64
    %v541 = vpop.permute.xlu0 %540
    %v543 = vmul.f32 %v535, %v541
    %545 = vrot.lane.b32.xlu0 %v543, 32
    %v546 = vpop.permute.xlu0 %545
    %v548 = vadd.f32 %v538, %v546
    %v549 = vtanh.pop %v548
    %551 = vrot.lane.b32.xlu0 %v549, 64
    %v552 = vpop.permute.xlu0 %551
    %v554 = vmul.f32 %v535, %v552
    %556 = vrot.lane.b32.xlu0 %v554, 32
    %v557 = vpop.permute.xlu0 %556
    %559 = vst.msk [vmem:[#allocation2 + $0x10] sm:$0xff] %vm245, %v557
    %v560 = vsel %vm245, %v557, 0
    %562 = vmatprep.subr.mxu0 0.0
    %563 = vmatpush1.msra.mxu0 %v98
    %564 = vmatprep.subr.mxu0 0.0
    %565 = vmatpush1.msra.mxu0 %v99
    %566 = vmatprep.subr.mxu0 0.0
    %567 = vmatpush1.msra.mxu0 %v100
    %568 = vmatprep.subr.mxu0 0.0
    %569 = vmatpush1.msra.mxu0 %v101
    %570 = vmatprep.subr.mxu0 0.0
    %571 = vmatpush1.msra.mxu0 0.0
    %572 = vmatprep.subr.mxu0 0.0
    %573 = vmatpush1.msra.mxu0 0.0
    %574 = vmatprep.subr.mxu0 0.0
    %575 = vmatpush1.msra.mxu0 0.0
    %576 = vmatprep.subr.mxu0 0.0
    %577 = vmatpush1.msra.mxu0 0.0
    %578 = vmatprep.subr.mxu0 0.0
    %579 = vmatpush1.msra.mxu0 0.0
    %580 = vmatprep.subr.mxu0 0.0
    %581 = vmatpush1.msra.mxu0 0.0
    %582 = vmatprep.subr.mxu0 0.0
    %583 = vmatpush1.msra.mxu0 0.0
    %584 = vmatprep.subr.mxu0 0.0
    %585 = vmatpush1.msra.mxu0 0.0
    %586 = vmatprep.subr.mxu0 0.0
    %587 = vmatpush1.msra.mxu0 0.0
    %588 = vmatprep.subr.mxu0 0.0
    %589 = vmatpush1.msra.mxu0 0.0
    %590 = vmatprep.subr.mxu0 0.0
    %591 = vmatpush1.msra.mxu0 0.0
    %592 = vmatprep.subr.mxu0 0.0
    %593 = vmatpush1.msra.mxu0 0.0
    %594 = vmatprep.subr.mxu0 0.0
    %595 = vmatpush1.msra.mxu0 0.0
    %596 = vmatprep.subr.mxu0 0.0
    %597 = vmatpush1.msra.mxu0 0.0
    %598 = vmatprep.subr.mxu0 0.0
    %599 = vmatpush1.msra.mxu0 0.0
    %600 = vmatprep.subr.mxu0 0.0
    %601 = vmatpush1.msra.mxu0 0.0
    %602 = vmatprep.subr.mxu0 0.0
    %603 = vmatpush1.msra.mxu0 0.0
    %604 = vmatprep.subr.mxu0 0.0
    %605 = vmatpush1.msra.mxu0 0.0
    %606 = vmatprep.subr.mxu0 0.0
    %607 = vmatpush1.msra.mxu0 0.0
    %608 = vmatprep.subr.mxu0 0.0
    %609 = vmatpush1.msra.mxu0 0.0
    %610 = vmatprep.subr.mxu0 0.0
    %611 = vmatpush1.msra.mxu0 0.0
    %612 = vmatprep.subr.mxu0 0.0
    %613 = vmatpush1.msra.mxu0 0.0
    %614 = vmatprep.subr.mxu0 0.0
    %615 = vmatpush1.msra.mxu0 0.0
    %616 = vmatprep.subr.mxu0 0.0
    %617 = vmatpush1.msra.mxu0 0.0
    %618 = vmatprep.subr.mxu0 0.0
    %619 = vmatpush1.msra.mxu0 0.0
    %620 = vmatprep.subr.mxu0 0.0
    %621 = vmatpush1.msra.mxu0 0.0
    %622 = vmatprep.subr.mxu0 0.0
    %623 = vmatpush1.msra.mxu0 0.0
    %624 = vmatprep.subr.mxu0 0.0
    %625 = vmatpush1.msra.mxu0 0.0
    %626 = vmatprep.mubr.f32.mxu0 0.0
    %627 = vmatmul.mubr.f32.gmra.mrb[0].mxu0 %v560
    %v628 = vpop.f32.mrb[0].mxu0
    %v629 = vadd.f32 0.0, %v628
    %v630 = vpop.f32.mrb[0].mxu0
    %631 = vdwg.mxu0
    %v632 = vadd.f32 %v220, %v629
    %v633 = vxor.u32 %v632, 2147483648
    %v634 = vmul.f32 %v633, 1.442695
    %v635 = vpow.pop %v634
    %v636 = vadd.f32 %v635, 1.0
    %v637 = vrcp.pop %v636
    %v638 = vmul.f32 1.0, %v637
    %v639 = vmul.f32 %v638, 2.0
    %v640 = vsub.f32 %v639, 1.0
    %v641 = vmul.f32 %v638, %v548
    %643 = vrot.lane.b32.xlu0 %v640, 64
    %v644 = vpop.permute.xlu0 %643
    %v646 = vmul.f32 %v638, %v644
    %648 = vrot.lane.b32.xlu0 %v646, 32
    %v649 = vpop.permute.xlu0 %648
    %v651 = vadd.f32 %v641, %v649
    %v652 = vtanh.pop %v651
    %654 = vrot.lane.b32.xlu0 %v652, 64
    %v655 = vpop.permute.xlu0 %654
    %v657 = vmul.f32 %v638, %v655
    %659 = vrot.lane.b32.xlu0 %v657, 32
    %v660 = vpop.permute.xlu0 %659
    %662 = vst.msk [vmem:[#allocation2 + $0x18] sm:$0xff] %vm245, %v660
    %v663 = vsel %vm245, %v660, 0
    %665 = vmatprep.subr.mxu0 0.0
    %666 = vmatpush1.msra.mxu0 %v98
    %667 = vmatprep.subr.mxu0 0.0
    %668 = vmatpush1.msra.mxu0 %v99
    %669 = vmatprep.subr.mxu0 0.0
    %670 = vmatpush1.msra.mxu0 %v100
    %671 = vmatprep.subr.mxu0 0.0
    %672 = vmatpush1.msra.mxu0 %v101
    %673 = vmatprep.subr.mxu0 0.0
    %674 = vmatpush1.msra.mxu0 0.0
    %675 = vmatprep.subr.mxu0 0.0
    %676 = vmatpush1.msra.mxu0 0.0
    %677 = vmatprep.subr.mxu0 0.0
    %678 = vmatpush1.msra.mxu0 0.0
    %679 = vmatprep.subr.mxu0 0.0
    %680 = vmatpush1.msra.mxu0 0.0
    %681 = vmatprep.subr.mxu0 0.0
    %682 = vmatpush1.msra.mxu0 0.0
    %683 = vmatprep.subr.mxu0 0.0
    %684 = vmatpush1.msra.mxu0 0.0
    %685 = vmatprep.subr.mxu0 0.0
    %686 = vmatpush1.msra.mxu0 0.0
    %687 = vmatprep.subr.mxu0 0.0
    %688 = vmatpush1.msra.mxu0 0.0
    %689 = vmatprep.subr.mxu0 0.0
    %690 = vmatpush1.msra.mxu0 0.0
    %691 = vmatprep.subr.mxu0 0.0
    %692 = vmatpush1.msra.mxu0 0.0
    %693 = vmatprep.subr.mxu0 0.0
    %694 = vmatpush1.msra.mxu0 0.0
    %695 = vmatprep.subr.mxu0 0.0
    %696 = vmatpush1.msra.mxu0 0.0
    %697 = vmatprep.subr.mxu0 0.0
    %698 = vmatpush1.msra.mxu0 0.0
    %699 = vmatprep.subr.mxu0 0.0
    %700 = vmatpush1.msra.mxu0 0.0
    %701 = vmatprep.subr.mxu0 0.0
    %702 = vmatpush1.msra.mxu0 0.0
    %703 = vmatprep.subr.mxu0 0.0
    %704 = vmatpush1.msra.mxu0 0.0
    %705 = vmatprep.subr.mxu0 0.0
    %706 = vmatpush1.msra.mxu0 0.0
    %707 = vmatprep.subr.mxu0 0.0
    %708 = vmatpush1.msra.mxu0 0.0
    %709 = vmatprep.subr.mxu0 0.0
    %710 = vmatpush1.msra.mxu0 0.0
    %711 = vmatprep.subr.mxu0 0.0
    %712 = vmatpush1.msra.mxu0 0.0
    %713 = vmatprep.subr.mxu0 0.0
    %714 = vmatpush1.msra.mxu0 0.0
    %715 = vmatprep.subr.mxu0 0.0
    %716 = vmatpush1.msra.mxu0 0.0
    %717 = vmatprep.subr.mxu0 0.0
    %718 = vmatpush1.msra.mxu0 0.0
    %719 = vmatprep.subr.mxu0 0.0
    %720 = vmatpush1.msra.mxu0 0.0
    %721 = vmatprep.subr.mxu0 0.0
    %722 = vmatpush1.msra.mxu0 0.0
    %723 = vmatprep.subr.mxu0 0.0
    %724 = vmatpush1.msra.mxu0 0.0
    %725 = vmatprep.subr.mxu0 0.0
    %726 = vmatpush1.msra.mxu0 0.0
    %727 = vmatprep.subr.mxu0 0.0
    %728 = vmatpush1.msra.mxu0 0.0
    %729 = vmatprep.mubr.f32.mxu0 0.0
    %730 = vmatmul.mubr.f32.gmra.mrb[0].mxu0 %v663
    %v731 = vpop.f32.mrb[0].mxu0
    %v732 = vadd.f32 0.0, %v731
    %v733 = vpop.f32.mrb[0].mxu0
    %734 = vdwg.mxu0
    %v735 = vadd.f32 %v225, %v732
    %v736 = vxor.u32 %v735, 2147483648
    %v737 = vmul.f32 %v736, 1.442695
    %v738 = vpow.pop %v737
    %v739 = vadd.f32 %v738, 1.0
    %v740 = vrcp.pop %v739
    %v741 = vmul.f32 1.0, %v740
    %v742 = vmul.f32 %v741, 2.0
    %v743 = vsub.f32 %v742, 1.0
    %v744 = vmul.f32 %v741, %v651
    %746 = vrot.lane.b32.xlu0 %v743, 64
    %v747 = vpop.permute.xlu0 %746
    %v749 = vmul.f32 %v741, %v747
    %751 = vrot.lane.b32.xlu0 %v749, 32
    %v752 = vpop.permute.xlu0 %751
    %v754 = vadd.f32 %v744, %v752
    %v755 = vtanh.pop %v754
    %757 = vrot.lane.b32.xlu0 %v755, 64
    %v758 = vpop.permute.xlu0 %757
    %v760 = vmul.f32 %v741, %v758
    %762 = vrot.lane.b32.xlu0 %v760, 32
    %v763 = vpop.permute.xlu0 %762
    %765 = vst.msk [vmem:[#allocation2 + $0x20] sm:$0xff] %vm245, %v763
    %v766 = vsel %vm245, %v763, 0
    %768 = vmatprep.subr.mxu0 0.0
    %769 = vmatpush1.msra.mxu0 %v98
    %770 = vmatprep.subr.mxu0 0.0
    %771 = vmatpush1.msra.mxu0 %v99
    %772 = vmatprep.subr.mxu0 0.0
    %773 = vmatpush1.msra.mxu0 %v100
    %774 = vmatprep.subr.mxu0 0.0
    %775 = vmatpush1.msra.mxu0 %v101
    %776 = vmatprep.subr.mxu0 0.0
    %777 = vmatpush1.msra.mxu0 0.0
    %778 = vmatprep.subr.mxu0 0.0
    %779 = vmatpush1.msra.mxu0 0.0
    %780 = vmatprep.subr.mxu0 0.0
    %781 = vmatpush1.msra.mxu0 0.0
    %782 = vmatprep.subr.mxu0 0.0
    %783 = vmatpush1.msra.mxu0 0.0
    %784 = vmatprep.subr.mxu0 0.0
    %785 = vmatpush1.msra.mxu0 0.0
    %786 = vmatprep.subr.mxu0 0.0
    %787 = vmatpush1.msra.mxu0 0.0
    %788 = vmatprep.subr.mxu0 0.0
    %789 = vmatpush1.msra.mxu0 0.0
    %790 = vmatprep.subr.mxu0 0.0
    %791 = vmatpush1.msra.mxu0 0.0
    %792 = vmatprep.subr.mxu0 0.0
    %793 = vmatpush1.msra.mxu0 0.0
    %794 = vmatprep.subr.mxu0 0.0
    %795 = vmatpush1.msra.mxu0 0.0
    %796 = vmatprep.subr.mxu0 0.0
    %797 = vmatpush1.msra.mxu0 0.0
    %798 = vmatprep.subr.mxu0 0.0
    %799 = vmatpush1.msra.mxu0 0.0
    %800 = vmatprep.subr.mxu0 0.0
    %801 = vmatpush1.msra.mxu0 0.0
    %802 = vmatprep.subr.mxu0 0.0
    %803 = vmatpush1.msra.mxu0 0.0
    %804 = vmatprep.subr.mxu0 0.0
    %805 = vmatpush1.msra.mxu0 0.0
    %806 = vmatprep.subr.mxu0 0.0
    %807 = vmatpush1.msra.mxu0 0.0
    %808 = vmatprep.subr.mxu0 0.0
    %809 = vmatpush1.msra.mxu0 0.0
    %810 = vmatprep.subr.mxu0 0.0
    %811 = vmatpush1.msra.mxu0 0.0
    %812 = vmatprep.subr.mxu0 0.0
    %813 = vmatpush1.msra.mxu0 0.0
    %814 = vmatprep.subr.mxu0 0.0
    %815 = vmatpush1.msra.mxu0 0.0
    %816 = vmatprep.subr.mxu0 0.0
    %817 = vmatpush1.msra.mxu0 0.0
    %818 = vmatprep.subr.mxu0 0.0
    %819 = vmatpush1.msra.mxu0 0.0
    %820 = vmatprep.subr.mxu0 0.0
    %821 = vmatpush1.msra.mxu0 0.0
    %822 = vmatprep.subr.mxu0 0.0
    %823 = vmatpush1.msra.mxu0 0.0
    %824 = vmatprep.subr.mxu0 0.0
    %825 = vmatpush1.msra.mxu0 0.0
    %826 = vmatprep.subr.mxu0 0.0
    %827 = vmatpush1.msra.mxu0 0.0
    %828 = vmatprep.subr.mxu0 0.0
    %829 = vmatpush1.msra.mxu0 0.0
    %830 = vmatprep.subr.mxu0 0.0
    %831 = vmatpush1.msra.mxu0 0.0
    %832 = vmatprep.mubr.f32.mxu0 0.0
    %833 = vmatmul.mubr.f32.gmra.mrb[0].mxu0 %v766
    %v834 = vpop.f32.mrb[0].mxu0
    %v835 = vadd.f32 0.0, %v834
    %v836 = vpop.f32.mrb[0].mxu0
    %837 = vdwg.mxu0
    %v838 = vadd.f32 %v230, %v835
    %v839 = vxor.u32 %v838, 2147483648
    %v840 = vmul.f32 %v839, 1.442695
    %v841 = vpow.pop %v840
    %v842 = vadd.f32 %v841, 1.0
    %v843 = vrcp.pop %v842
    %v844 = vmul.f32 1.0, %v843
    %v845 = vmul.f32 %v844, 2.0
    %v846 = vsub.f32 %v845, 1.0
    %v847 = vmul.f32 %v844, %v754
    %849 = vrot.lane.b32.xlu0 %v846, 64
    %v850 = vpop.permute.xlu0 %849
    %v852 = vmul.f32 %v844, %v850
    %854 = vrot.lane.b32.xlu0 %v852, 32
    %v855 = vpop.permute.xlu0 %854
    %v857 = vadd.f32 %v847, %v855
    %v858 = vtanh.pop %v857
    %860 = vrot.lane.b32.xlu0 %v858, 64
    %v861 = vpop.permute.xlu0 %860
    %v863 = vmul.f32 %v844, %v861
    %865 = vrot.lane.b32.xlu0 %v863, 32
    %v866 = vpop.permute.xlu0 %865
    %868 = vst.msk [vmem:[#allocation2 + $0x28] sm:$0xff] %vm245, %v866
    %v869 = vsel %vm245, %v866, 0
    %871 = vmatprep.subr.mxu0 0.0
    %872 = vmatpush1.msra.mxu0 %v98
    %873 = vmatprep.subr.mxu0 0.0
    %874 = vmatpush1.msra.mxu0 %v99
    %875 = vmatprep.subr.mxu0 0.0
    %876 = vmatpush1.msra.mxu0 %v100
    %877 = vmatprep.subr.mxu0 0.0
    %878 = vmatpush1.msra.mxu0 %v101
    %879 = vmatprep.subr.mxu0 0.0
    %880 = vmatpush1.msra.mxu0 0.0
    %881 = vmatprep.subr.mxu0 0.0
    %882 = vmatpush1.msra.mxu0 0.0
    %883 = vmatprep.subr.mxu0 0.0
    %884 = vmatpush1.msra.mxu0 0.0
    %885 = vmatprep.subr.mxu0 0.0
    %886 = vmatpush1.msra.mxu0 0.0
    %887 = vmatprep.subr.mxu0 0.0
    %888 = vmatpush1.msra.mxu0 0.0
    %889 = vmatprep.subr.mxu0 0.0
    %890 = vmatpush1.msra.mxu0 0.0
    %891 = vmatprep.subr.mxu0 0.0
    %892 = vmatpush1.msra.mxu0 0.0
    %893 = vmatprep.subr.mxu0 0.0
    %894 = vmatpush1.msra.mxu0 0.0
    %895 = vmatprep.subr.mxu0 0.0
    %896 = vmatpush1.msra.mxu0 0.0
    %897 = vmatprep.subr.mxu0 0.0
    %898 = vmatpush1.msra.mxu0 0.0
    %899 = vmatprep.subr.mxu0 0.0
    %900 = vmatpush1.msra.mxu0 0.0
    %901 = vmatprep.subr.mxu0 0.0
    %902 = vmatpush1.msra.mxu0 0.0
    %903 = vmatprep.subr.mxu0 0.0
    %904 = vmatpush1.msra.mxu0 0.0
    %905 = vmatprep.subr.mxu0 0.0
    %906 = vmatpush1.msra.mxu0 0.0
    %907 = vmatprep.subr.mxu0 0.0
    %908 = vmatpush1.msra.mxu0 0.0
    %909 = vmatprep.subr.mxu0 0.0
    %910 = vmatpush1.msra.mxu0 0.0
    %911 = vmatprep.subr.mxu0 0.0
    %912 = vmatpush1.msra.mxu0 0.0
    %913 = vmatprep.subr.mxu0 0.0
    %914 = vmatpush1.msra.mxu0 0.0
    %915 = vmatprep.subr.mxu0 0.0
    %916 = vmatpush1.msra.mxu0 0.0
    %917 = vmatprep.subr.mxu0 0.0
    %918 = vmatpush1.msra.mxu0 0.0
    %919 = vmatprep.subr.mxu0 0.0
    %920 = vmatpush1.msra.mxu0 0.0
    %921 = vmatprep.subr.mxu0 0.0
    %922 = vmatpush1.msra.mxu0 0.0
    %923 = vmatprep.subr.mxu0 0.0
    %924 = vmatpush1.msra.mxu0 0.0
    %925 = vmatprep.subr.mxu0 0.0
    %926 = vmatpush1.msra.mxu0 0.0
    %927 = vmatprep.subr.mxu0 0.0
    %928 = vmatpush1.msra.mxu0 0.0
    %929 = vmatprep.subr.mxu0 0.0
    %930 = vmatpush1.msra.mxu0 0.0
    %931 = vmatprep.subr.mxu0 0.0
    %932 = vmatpush1.msra.mxu0 0.0
    %933 = vmatprep.subr.mxu0 0.0
    %934 = vmatpush1.msra.mxu0 0.0
    %935 = vmatprep.mubr.f32.mxu0 0.0
    %936 = vmatmul.mubr.f32.gmra.mrb[0].mxu0 %v869
    %v937 = vpop.f32.mrb[0].mxu0
    %v938 = vadd.f32 0.0, %v937
    %v939 = vpop.f32.mrb[0].mxu0
    %940 = vdwg.mxu0
    %v941 = vadd.f32 %v235, %v938
    %v942 = vxor.u32 %v941, 2147483648
    %v943 = vmul.f32 %v942, 1.442695
    %v944 = vpow.pop %v943
    %v945 = vadd.f32 %v944, 1.0
    %v946 = vrcp.pop %v945
    %v947 = vmul.f32 1.0, %v946
    %v948 = vmul.f32 %v947, 2.0
    %v949 = vsub.f32 %v948, 1.0
    %v950 = vmul.f32 %v947, %v857
    %952 = vrot.lane.b32.xlu0 %v949, 64
    %v953 = vpop.permute.xlu0 %952
    %v955 = vmul.f32 %v947, %v953
    %957 = vrot.lane.b32.xlu0 %v955, 32
    %v958 = vpop.permute.xlu0 %957
    %v960 = vadd.f32 %v950, %v958
    %v961 = vtanh.pop %v960
    %963 = vrot.lane.b32.xlu0 %v961, 64
    %v964 = vpop.permute.xlu0 %963
    %v966 = vmul.f32 %v947, %v964
    %968 = vrot.lane.b32.xlu0 %v966, 32
    %v969 = vpop.permute.xlu0 %968
    %971 = vst.msk [vmem:[#allocation2 + $0x30] sm:$0xff] %vm245, %v969
    %v972 = vsel %vm245, %v969, 0
    %974 = vmatprep.subr.mxu0 0.0
    %975 = vmatpush1.msra.mxu0 %v98
    %976 = vmatprep.subr.mxu0 0.0
    %977 = vmatpush1.msra.mxu0 %v99
    %978 = vmatprep.subr.mxu0 0.0
    %979 = vmatpush1.msra.mxu0 %v100
    %980 = vmatprep.subr.mxu0 0.0
    %981 = vmatpush1.msra.mxu0 %v101
    %982 = vmatprep.subr.mxu0 0.0
    %983 = vmatpush1.msra.mxu0 0.0
    %984 = vmatprep.subr.mxu0 0.0
    %985 = vmatpush1.msra.mxu0 0.0
    %986 = vmatprep.subr.mxu0 0.0
    %987 = vmatpush1.msra.mxu0 0.0
    %988 = vmatprep.subr.mxu0 0.0
    %989 = vmatpush1.msra.mxu0 0.0
    %990 = vmatprep.subr.mxu0 0.0
    %991 = vmatpush1.msra.mxu0 0.0
    %992 = vmatprep.subr.mxu0 0.0
    %993 = vmatpush1.msra.mxu0 0.0
    %994 = vmatprep.subr.mxu0 0.0
    %995 = vmatpush1.msra.mxu0 0.0
    %996 = vmatprep.subr.mxu0 0.0
    %997 = vmatpush1.msra.mxu0 0.0
    %998 = vmatprep.subr.mxu0 0.0
    %999 = vmatpush1.msra.mxu0 0.0
    %1000 = vmatprep.subr.mxu0 0.0
    %1001 = vmatpush1.msra.mxu0 0.0
    %1002 = vmatprep.subr.mxu0 0.0
    %1003 = vmatpush1.msra.mxu0 0.0
    %1004 = vmatprep.subr.mxu0 0.0
    %1005 = vmatpush1.msra.mxu0 0.0
    %1006 = vmatprep.subr.mxu0 0.0
    %1007 = vmatpush1.msra.mxu0 0.0
    %1008 = vmatprep.subr.mxu0 0.0
    %1009 = vmatpush1.msra.mxu0 0.0
    %1010 = vmatprep.subr.mxu0 0.0
    %1011 = vmatpush1.msra.mxu0 0.0
    %1012 = vmatprep.subr.mxu0 0.0
    %1013 = vmatpush1.msra.mxu0 0.0
    %1014 = vmatprep.subr.mxu0 0.0
    %1015 = vmatpush1.msra.mxu0 0.0
    %1016 = vmatprep.subr.mxu0 0.0
    %1017 = vmatpush1.msra.mxu0 0.0
    %1018 = vmatprep.subr.mxu0 0.0
    %1019 = vmatpush1.msra.mxu0 0.0
    %1020 = vmatprep.subr.mxu0 0.0
    %1021 = vmatpush1.msra.mxu0 0.0
    %1022 = vmatprep.subr.mxu0 0.0
    %1023 = vmatpush1.msra.mxu0 0.0
    %1024 = vmatprep.subr.mxu0 0.0
    %1025 = vmatpush1.msra.mxu0 0.0
    %1026 = vmatprep.subr.mxu0 0.0
    %1027 = vmatpush1.msra.mxu0 0.0
    %1028 = vmatprep.subr.mxu0 0.0
    %1029 = vmatpush1.msra.mxu0 0.0
    %1030 = vmatprep.subr.mxu0 0.0
    %1031 = vmatpush1.msra.mxu0 0.0
    %1032 = vmatprep.subr.mxu0 0.0
    %1033 = vmatpush1.msra.mxu0 0.0
    %1034 = vmatprep.subr.mxu0 0.0
    %1035 = vmatpush1.msra.mxu0 0.0
    %1036 = vmatprep.subr.mxu0 0.0
    %1037 = vmatpush1.msra.mxu0 0.0
    %1038 = vmatprep.mubr.f32.mxu0 0.0
    %1039 = vmatmul.mubr.f32.gmra.mrb[0].mxu0 %v972
    %v1040 = vpop.f32.mrb[0].mxu0
    %v1041 = vadd.f32 0.0, %v1040
    %v1042 = vpop.f32.mrb[0].mxu0
    %1043 = vdwg.mxu0
    %v1044 = vadd.f32 %v240, %v1041
    %v1045 = vxor.u32 %v1044, 2147483648
    %v1046 = vmul.f32 %v1045, 1.442695
    %v1047 = vpow.pop %v1046
    %v1048 = vadd.f32 %v1047, 1.0
    %v1049 = vrcp.pop %v1048
    %v1050 = vmul.f32 1.0, %v1049
    %v1051 = vmul.f32 %v1050, 2.0
    %v1052 = vsub.f32 %v1051, 1.0
    %v1053 = vmul.f32 %v1050, %v960
    %1055 = vrot.lane.b32.xlu0 %v1052, 64
    %v1056 = vpop.permute.xlu0 %1055
    %v1058 = vmul.f32 %v1050, %v1056
    %1060 = vrot.lane.b32.xlu0 %v1058, 32
    %v1061 = vpop.permute.xlu0 %1060
    %v1063 = vadd.f32 %v1053, %v1061
    %v1064 = vtanh.pop %v1063
    %1066 = vrot.lane.b32.xlu0 %v1064, 64
    %v1067 = vpop.permute.xlu0 %1066
    %v1069 = vmul.f32 %v1050, %v1067
    %1071 = vrot.lane.b32.xlu0 %v1069, 32
    %v1072 = vpop.permute.xlu0 %1071
    %1074 = vst.msk [vmem:[#allocation2 + $0x38] sm:$0xff] %vm245, %v1072
    %v1075 = vsel %vm245, %v1072, %v1063
    %vm1076 = vcmask 523264
    %1077 = vst.msk [vmem:[#allocation12] sm:$0xff] %vm1076, %v1075
    %v1078 = vld [vmem:[#allocation2] sm:$0xff]
    %v1079 = vld [vmem:[#allocation2 + $0x8] sm:$0xff]
    %v1080 = vld [vmem:[#allocation2 + $0x10] sm:$0xff]
    %v1081 = vld [vmem:[#allocation2 + $0x18] sm:$0xff]
    %v1082 = vld [vmem:[#allocation2 + $0x20] sm:$0xff]
    %v1083 = vld [vmem:[#allocation2 + $0x28] sm:$0xff]
    %v1084 = vld [vmem:[#allocation2 + $0x30] sm:$0xff]
    %v1085 = vld [vmem:[#allocation2 + $0x38] sm:$0xff]
    %v1086 = vld [vmem:[#allocation6] sm:$0xff]
    %v1087 = vld [vmem:[#allocation6 + $0x8] sm:$0xff]
    %v1088 = vld [vmem:[#allocation6 + $0x10] sm:$0xff]
    %v1089 = vld [vmem:[#allocation6 + $0x18] sm:$0xff]
    %s1090 = scalar_lea.vmem %s3, 32
    %v1091 = vld [vmem:[%s1090] sm:$0xff]
    %v1092 = vld [vmem:[%s1090 + $0x8] sm:$0xff]
    %v1093 = vld [vmem:[%s1090 + $0x10] sm:$0xff]
    %v1094 = vld [vmem:[%s1090 + $0x18] sm:$0xff]
    %s1095 = scalar_lea.vmem %s4, 1
    %v1096 = vld [vmem:[%s1095] sm:$0x1]
    %v1098 = vlaneseq
    %v1099 = vshrl.u32 %v1098, 7
    %v1100 = vsub.s32 0, %v1099
    %v1101 = vrot.slane %v1096, %v1100
    %v1104 = vsel %vm245, %v1078, 0
    %v1107 = vsel %vm245, %v1079, 0
    %v1110 = vsel %vm245, %v1080, 0
    %v1113 = vsel %vm245, %v1081, 0
    %v1116 = vsel %vm245, %v1082, 0
    %v1119 = vsel %vm245, %v1083, 0
    %v1122 = vsel %vm245, %v1084, 0
    %v1125 = vsel %vm245, %v1085, 0
    %1127 = vmatprep.subr.mxu0 0.0
    %1128 = vmatpush1.msra.mxu0 %v1086
    %1129 = vmatprep.subr.mxu0 0.0
    %1130 = vmatpush1.msra.mxu0 %v1087
    %1131 = vmatprep.subr.mxu0 0.0
    %1132 = vmatpush1.msra.mxu0 %v1088
    %1133 = vmatprep.subr.mxu0 0.0
    %1134 = vmatpush1.msra.mxu0 %v1089
    %1135 = vmatprep.subr.mxu0 0.0
    %1136 = vmatpush1.msra.mxu0 0.0
    %1137 = vmatprep.subr.mxu0 0.0
    %1138 = vmatpush1.msra.mxu0 0.0
    %1139 = vmatprep.subr.mxu0 0.0
    %1140 = vmatpush1.msra.mxu0 0.0
    %1141 = vmatprep.subr.mxu0 0.0
    %1142 = vmatpush1.msra.mxu0 0.0
    %1143 = vmatprep.subr.mxu0 0.0
    %1144 = vmatpush1.msra.mxu0 0.0
    %1145 = vmatprep.subr.mxu0 0.0
    %1146 = vmatpush1.msra.mxu0 0.0
    %1147 = vmatprep.subr.mxu0 0.0
    %1148 = vmatpush1.msra.mxu0 0.0
    %1149 = vmatprep.subr.mxu0 0.0
    %1150 = vmatpush1.msra.mxu0 0.0
    %1151 = vmatprep.subr.mxu0 0.0
    %1152 = vmatpush1.msra.mxu0 0.0
    %1153 = vmatprep.subr.mxu0 0.0
    %1154 = vmatpush1.msra.mxu0 0.0
    %1155 = vmatprep.subr.mxu0 0.0
    %1156 = vmatpush1.msra.mxu0 0.0
    %1157 = vmatprep.subr.mxu0 0.0
    %1158 = vmatpush1.msra.mxu0 0.0
    %1159 = vmatprep.subr.mxu0 0.0
    %1160 = vmatpush1.msra.mxu0 0.0
    %1161 = vmatprep.subr.mxu0 0.0
    %1162 = vmatpush1.msra.mxu0 0.0
    %1163 = vmatprep.subr.mxu0 0.0
    %1164 = vmatpush1.msra.mxu0 0.0
    %1165 = vmatprep.subr.mxu0 0.0
    %1166 = vmatpush1.msra.mxu0 0.0
    %1167 = vmatprep.subr.mxu0 0.0
    %1168 = vmatpush1.msra.mxu0 0.0
    %1169 = vmatprep.subr.mxu0 0.0
    %1170 = vmatpush1.msra.mxu0 0.0
    %1171 = vmatprep.subr.mxu0 0.0
    %1172 = vmatpush1.msra.mxu0 0.0
    %1173 = vmatprep.subr.mxu0 0.0
    %1174 = vmatpush1.msra.mxu0 0.0
    %1175 = vmatprep.subr.mxu0 0.0
    %1176 = vmatpush1.msra.mxu0 0.0
    %1177 = vmatprep.subr.mxu0 0.0
    %1178 = vmatpush1.msra.mxu0 0.0
    %1179 = vmatprep.subr.mxu0 0.0
    %1180 = vmatpush1.msra.mxu0 0.0
    %1181 = vmatprep.subr.mxu0 0.0
    %1182 = vmatpush1.msra.mxu0 0.0
    %1183 = vmatprep.subr.mxu0 0.0
    %1184 = vmatpush1.msra.mxu0 0.0
    %1185 = vmatprep.subr.mxu0 0.0
    %1186 = vmatpush1.msra.mxu0 0.0
    %1187 = vmatprep.subr.mxu0 0.0
    %1188 = vmatpush1.msra.mxu0 0.0
    %1189 = vmatprep.subr.mxu0 0.0
    %1190 = vmatpush1.msra.mxu0 0.0
    %1191 = vmatprep.mubr.f32.mxu0 0.0
    %1192 = vmatmul.mubr.f32.gmra.mrb[0].mxu0 %v1104
    %v1193 = vpop.f32.mrb[0].mxu0
    %v1194 = vadd.f32 %v1101, %v1193
    %v1195 = vpop.f32.mrb[0].mxu0
    %1196 = vmatprep.mubr.f32.mxu0 0.0
    %1197 = vmatmul.mubr.f32.gmra.mrb[0].mxu0 %v1107
    %v1198 = vpop.f32.mrb[0].mxu0
    %v1199 = vadd.f32 %v1101, %v1198
    %v1200 = vpop.f32.mrb[0].mxu0
    %1201 = vmatprep.mubr.f32.mxu0 0.0
    %1202 = vmatmul.mubr.f32.gmra.mrb[0].mxu0 %v1110
    %v1203 = vpop.f32.mrb[0].mxu0
    %v1204 = vadd.f32 %v1101, %v1203
    %v1205 = vpop.f32.mrb[0].mxu0
    %1206 = vmatprep.mubr.f32.mxu0 0.0
    %1207 = vmatmul.mubr.f32.gmra.mrb[0].mxu0 %v1113
    %v1208 = vpop.f32.mrb[0].mxu0
    %v1209 = vadd.f32 %v1101, %v1208
    %v1210 = vpop.f32.mrb[0].mxu0
    %1211 = vmatprep.mubr.f32.mxu0 0.0
    %1212 = vmatmul.mubr.f32.gmra.mrb[0].mxu0 %v1116
    %v1213 = vpop.f32.mrb[0].mxu0
    %v1214 = vadd.f32 %v1101, %v1213
    %v1215 = vpop.f32.mrb[0].mxu0
    %1216 = vmatprep.mubr.f32.mxu0 0.0
    %1217 = vmatmul.mubr.f32.gmra.mrb[0].mxu0 %v1119
    %v1218 = vpop.f32.mrb[0].mxu0
    %v1219 = vadd.f32 %v1101, %v1218
    %v1220 = vpop.f32.mrb[0].mxu0
    %1221 = vmatprep.mubr.f32.mxu0 0.0
    %1222 = vmatmul.mubr.f32.gmra.mrb[0].mxu0 %v1122
    %v1223 = vpop.f32.mrb[0].mxu0
    %v1224 = vadd.f32 %v1101, %v1223
    %v1225 = vpop.f32.mrb[0].mxu0
    %1226 = vmatprep.mubr.f32.mxu0 0.0
    %1227 = vmatmul.mubr.f32.gmra.mrb[0].mxu0 %v1125
    %v1228 = vpop.f32.mrb[0].mxu0
    %v1229 = vadd.f32 %v1101, %v1228
    %v1230 = vpop.f32.mrb[0].mxu0
    %1231 = vdwg.mxu0
    %s1232 = scalar_lea.vmem [#allocation8], 8
    %v1233 = vld [vmem:[%s1232] sm:$0xff]
    %s1234 = scalar_lea.vmem [#allocation9], 8
    %v1235 = vld [vmem:[%s1234] sm:$0xff]
    %v1237 = vsel %vm245, %v1233, 0
    %1239 = vmatprep.subr.mxu0 0.0
    %1240 = vmatpush1.msra.mxu0 %v1091
    %1241 = vmatprep.subr.mxu0 0.0
    %1242 = vmatpush1.msra.mxu0 %v1092
    %1243 = vmatprep.subr.mxu0 0.0
    %1244 = vmatpush1.msra.mxu0 %v1093
    %1245 = vmatprep.subr.mxu0 0.0
    %1246 = vmatpush1.msra.mxu0 %v1094
    %1247 = vmatprep.subr.mxu0 0.0
    %1248 = vmatpush1.msra.mxu0 0.0
    %1249 = vmatprep.subr.mxu0 0.0
    %1250 = vmatpush1.msra.mxu0 0.0
    %1251 = vmatprep.subr.mxu0 0.0
    %1252 = vmatpush1.msra.mxu0 0.0
    %1253 = vmatprep.subr.mxu0 0.0
    %1254 = vmatpush1.msra.mxu0 0.0
    %1255 = vmatprep.subr.mxu0 0.0
    %1256 = vmatpush1.msra.mxu0 0.0
    %1257 = vmatprep.subr.mxu0 0.0
    %1258 = vmatpush1.msra.mxu0 0.0
    %1259 = vmatprep.subr.mxu0 0.0
    %1260 = vmatpush1.msra.mxu0 0.0
    %1261 = vmatprep.subr.mxu0 0.0
    %1262 = vmatpush1.msra.mxu0 0.0
    %1263 = vmatprep.subr.mxu0 0.0
    %1264 = vmatpush1.msra.mxu0 0.0
    %1265 = vmatprep.subr.mxu0 0.0
    %1266 = vmatpush1.msra.mxu0 0.0
    %1267 = vmatprep.subr.mxu0 0.0
    %1268 = vmatpush1.msra.mxu0 0.0
    %1269 = vmatprep.subr.mxu0 0.0
    %1270 = vmatpush1.msra.mxu0 0.0
    %1271 = vmatprep.subr.mxu0 0.0
    %1272 = vmatpush1.msra.mxu0 0.0
    %1273 = vmatprep.subr.mxu0 0.0
    %1274 = vmatpush1.msra.mxu0 0.0
    %1275 = vmatprep.subr.mxu0 0.0
    %1276 = vmatpush1.msra.mxu0 0.0
    %1277 = vmatprep.subr.mxu0 0.0
    %1278 = vmatpush1.msra.mxu0 0.0
    %1279 = vmatprep.subr.mxu0 0.0
    %1280 = vmatpush1.msra.mxu0 0.0
    %1281 = vmatprep.subr.mxu0 0.0
    %1282 = vmatpush1.msra.mxu0 0.0
    %1283 = vmatprep.subr.mxu0 0.0
    %1284 = vmatpush1.msra.mxu0 0.0
    %1285 = vmatprep.subr.mxu0 0.0
    %1286 = vmatpush1.msra.mxu0 0.0
    %1287 = vmatprep.subr.mxu0 0.0
    %1288 = vmatpush1.msra.mxu0 0.0
    %1289 = vmatprep.subr.mxu0 0.0
    %1290 = vmatpush1.msra.mxu0 0.0
    %1291 = vmatprep.subr.mxu0 0.0
    %1292 = vmatpush1.msra.mxu0 0.0
    %1293 = vmatprep.subr.mxu0 0.0
    %1294 = vmatpush1.msra.mxu0 0.0
    %1295 = vmatprep.subr.mxu0 0.0
    %1296 = vmatpush1.msra.mxu0 0.0
    %1297 = vmatprep.subr.mxu0 0.0
    %1298 = vmatpush1.msra.mxu0 0.0
    %1299 = vmatprep.subr.mxu0 0.0
    %1300 = vmatpush1.msra.mxu0 0.0
    %1301 = vmatprep.subr.mxu0 0.0
    %1302 = vmatpush1.msra.mxu0 0.0
    %1303 = vmatprep.mubr.f32.mxu0 0.0
    %1304 = vmatmul.mubr.f32.gmra.mrb[0].mxu0 %v1237
    %v1305 = vpop.f32.mrb[0].mxu0
    %v1306 = vadd.f32 0.0, %v1305
    %v1307 = vpop.f32.mrb[0].mxu0
    %1308 = vdwg.mxu0
    %v1309 = vadd.f32 %v1194, %v1306
    %v1310 = vxor.u32 %v1309, 2147483648
    %v1311 = vmul.f32 %v1310, 1.442695
    %v1312 = vpow.pop %v1311
    %v1313 = vadd.f32 %v1312, 1.0
    %v1314 = vrcp.pop %v1313
    %v1315 = vmul.f32 1.0, %v1314
    %v1316 = vmul.f32 %v1315, 2.0
    %v1317 = vsub.f32 %v1316, 1.0
    %1319 = vrot.lane.b32.xlu0 %v1235, 32
    %v1320 = vpop.permute.xlu0 %1319
    %v1322 = vmul.f32 %v1315, %v1320
    %1324 = vrot.lane.b32.xlu0 %v1317, 64
    %v1325 = vpop.permute.xlu0 %1324
    %v1327 = vmul.f32 %v1315, %v1325
    %1329 = vrot.lane.b32.xlu0 %v1327, 32
    %v1330 = vpop.permute.xlu0 %1329
    %v1332 = vadd.f32 %v1322, %v1330
    %v1333 = vtanh.pop %v1332
    %1335 = vrot.lane.b32.xlu0 %v1333, 64
    %v1336 = vpop.permute.xlu0 %1335
    %v1338 = vmul.f32 %v1315, %v1336
    %1340 = vrot.lane.b32.xlu0 %v1338, 32
    %v1341 = vpop.permute.xlu0 %1340
    %1343 = vst.msk [vmem:[#allocation2] sm:$0xff] %vm245, %v1341
    %v1344 = vsel %vm245, %v1341, 0
    %1346 = vmatprep.subr.mxu0 0.0
    %1347 = vmatpush1.msra.mxu0 %v1091
    %1348 = vmatprep.subr.mxu0 0.0
    %1349 = vmatpush1.msra.mxu0 %v1092
    %1350 = vmatprep.subr.mxu0 0.0
    %1351 = vmatpush1.msra.mxu0 %v1093
    %1352 = vmatprep.subr.mxu0 0.0
    %1353 = vmatpush1.msra.mxu0 %v1094
    %1354 = vmatprep.subr.mxu0 0.0
    %1355 = vmatpush1.msra.mxu0 0.0
    %1356 = vmatprep.subr.mxu0 0.0
    %1357 = vmatpush1.msra.mxu0 0.0
    %1358 = vmatprep.subr.mxu0 0.0
    %1359 = vmatpush1.msra.mxu0 0.0
    %1360 = vmatprep.subr.mxu0 0.0
    %1361 = vmatpush1.msra.mxu0 0.0
    %1362 = vmatprep.subr.mxu0 0.0
    %1363 = vmatpush1.msra.mxu0 0.0
    %1364 = vmatprep.subr.mxu0 0.0
    %1365 = vmatpush1.msra.mxu0 0.0
    %1366 = vmatprep.subr.mxu0 0.0
    %1367 = vmatpush1.msra.mxu0 0.0
    %1368 = vmatprep.subr.mxu0 0.0
    %1369 = vmatpush1.msra.mxu0 0.0
    %1370 = vmatprep.subr.mxu0 0.0
    %1371 = vmatpush1.msra.mxu0 0.0
    %1372 = vmatprep.subr.mxu0 0.0
    %1373 = vmatpush1.msra.mxu0 0.0
    %1374 = vmatprep.subr.mxu0 0.0
    %1375 = vmatpush1.msra.mxu0 0.0
    %1376 = vmatprep.subr.mxu0 0.0
    %1377 = vmatpush1.msra.mxu0 0.0
    %1378 = vmatprep.subr.mxu0 0.0
    %1379 = vmatpush1.msra.mxu0 0.0
    %1380 = vmatprep.subr.mxu0 0.0
    %1381 = vmatpush1.msra.mxu0 0.0
    %1382 = vmatprep.subr.mxu0 0.0
    %1383 = vmatpush1.msra.mxu0 0.0
    %1384 = vmatprep.subr.mxu0 0.0
    %1385 = vmatpush1.msra.mxu0 0.0
    %1386 = vmatprep.subr.mxu0 0.0
    %1387 = vmatpush1.msra.mxu0 0.0
    %1388 = vmatprep.subr.mxu0 0.0
    %1389 = vmatpush1.msra.mxu0 0.0
    %1390 = vmatprep.subr.mxu0 0.0
    %1391 = vmatpush1.msra.mxu0 0.0
    %1392 = vmatprep.subr.mxu0 0.0
    %1393 = vmatpush1.msra.mxu0 0.0
    %1394 = vmatprep.subr.mxu0 0.0
    %1395 = vmatpush1.msra.mxu0 0.0
    %1396 = vmatprep.subr.mxu0 0.0
    %1397 = vmatpush1.msra.mxu0 0.0
    %1398 = vmatprep.subr.mxu0 0.0
    %1399 = vmatpush1.msra.mxu0 0.0
    %1400 = vmatprep.subr.mxu0 0.0
    %1401 = vmatpush1.msra.mxu0 0.0
    %1402 = vmatprep.subr.mxu0 0.0
    %1403 = vmatpush1.msra.mxu0 0.0
    %1404 = vmatprep.subr.mxu0 0.0
    %1405 = vmatpush1.msra.mxu0 0.0
    %1406 = vmatprep.subr.mxu0 0.0
    %1407 = vmatpush1.msra.mxu0 0.0
    %1408 = vmatprep.subr.mxu0 0.0
    %1409 = vmatpush1.msra.mxu0 0.0
    %1410 = vmatprep.mubr.f32.mxu0 0.0
    %1411 = vmatmul.mubr.f32.gmra.mrb[0].mxu0 %v1344
    %v1412 = vpop.f32.mrb[0].mxu0
    %v1413 = vadd.f32 0.0, %v1412
    %v1414 = vpop.f32.mrb[0].mxu0
    %1415 = vdwg.mxu0
    %v1416 = vadd.f32 %v1199, %v1413
    %v1417 = vxor.u32 %v1416, 2147483648
    %v1418 = vmul.f32 %v1417, 1.442695
    %v1419 = vpow.pop %v1418
    %v1420 = vadd.f32 %v1419, 1.0
    %v1421 = vrcp.pop %v1420
    %v1422 = vmul.f32 1.0, %v1421
    %v1423 = vmul.f32 %v1422, 2.0
    %v1424 = vsub.f32 %v1423, 1.0
    %v1425 = vmul.f32 %v1422, %v1332
    %1427 = vrot.lane.b32.xlu0 %v1424, 64
    %v1428 = vpop.permute.xlu0 %1427
    %v1430 = vmul.f32 %v1422, %v1428
    %1432 = vrot.lane.b32.xlu0 %v1430, 32
    %v1433 = vpop.permute.xlu0 %1432
    %v1435 = vadd.f32 %v1425, %v1433
    %v1436 = vtanh.pop %v1435
    %1438 = vrot.lane.b32.xlu0 %v1436, 64
    %v1439 = vpop.permute.xlu0 %1438
    %v1441 = vmul.f32 %v1422, %v1439
    %1443 = vrot.lane.b32.xlu0 %v1441, 32
    %v1444 = vpop.permute.xlu0 %1443
    %1446 = vst.msk [vmem:[#allocation2 + $0x8] sm:$0xff] %vm245, %v1444
    %v1447 = vsel %vm245, %v1444, 0
    %1449 = vmatprep.subr.mxu0 0.0
    %1450 = vmatpush1.msra.mxu0 %v1091
    %1451 = vmatprep.subr.mxu0 0.0
    %1452 = vmatpush1.msra.mxu0 %v1092
    %1453 = vmatprep.subr.mxu0 0.0
    %1454 = vmatpush1.msra.mxu0 %v1093
    %1455 = vmatprep.subr.mxu0 0.0
    %1456 = vmatpush1.msra.mxu0 %v1094
    %1457 = vmatprep.subr.mxu0 0.0
    %1458 = vmatpush1.msra.mxu0 0.0
    %1459 = vmatprep.subr.mxu0 0.0
    %1460 = vmatpush1.msra.mxu0 0.0
    %1461 = vmatprep.subr.mxu0 0.0
    %1462 = vmatpush1.msra.mxu0 0.0
    %1463 = vmatprep.subr.mxu0 0.0
    %1464 = vmatpush1.msra.mxu0 0.0
    %1465 = vmatprep.subr.mxu0 0.0
    %1466 = vmatpush1.msra.mxu0 0.0
    %1467 = vmatprep.subr.mxu0 0.0
    %1468 = vmatpush1.msra.mxu0 0.0
    %1469 = vmatprep.subr.mxu0 0.0
    %1470 = vmatpush1.msra.mxu0 0.0
    %1471 = vmatprep.subr.mxu0 0.0
    %1472 = vmatpush1.msra.mxu0 0.0
    %1473 = vmatprep.subr.mxu0 0.0
    %1474 = vmatpush1.msra.mxu0 0.0
    %1475 = vmatprep.subr.mxu0 0.0
    %1476 = vmatpush1.msra.mxu0 0.0
    %1477 = vmatprep.subr.mxu0 0.0
    %1478 = vmatpush1.msra.mxu0 0.0
    %1479 = vmatprep.subr.mxu0 0.0
    %1480 = vmatpush1.msra.mxu0 0.0
    %1481 = vmatprep.subr.mxu0 0.0
    %1482 = vmatpush1.msra.mxu0 0.0
    %1483 = vmatprep.subr.mxu0 0.0
    %1484 = vmatpush1.msra.mxu0 0.0
    %1485 = vmatprep.subr.mxu0 0.0
    %1486 = vmatpush1.msra.mxu0 0.0
    %1487 = vmatprep.subr.mxu0 0.0
    %1488 = vmatpush1.msra.mxu0 0.0
    %1489 = vmatprep.subr.mxu0 0.0
    %1490 = vmatpush1.msra.mxu0 0.0
    %1491 = vmatprep.subr.mxu0 0.0
    %1492 = vmatpush1.msra.mxu0 0.0
    %1493 = vmatprep.subr.mxu0 0.0
    %1494 = vmatpush1.msra.mxu0 0.0
    %1495 = vmatprep.subr.mxu0 0.0
    %1496 = vmatpush1.msra.mxu0 0.0
    %1497 = vmatprep.subr.mxu0 0.0
    %1498 = vmatpush1.msra.mxu0 0.0
    %1499 = vmatprep.subr.mxu0 0.0
    %1500 = vmatpush1.msra.mxu0 0.0
    %1501 = vmatprep.subr.mxu0 0.0
    %1502 = vmatpush1.msra.mxu0 0.0
    %1503 = vmatprep.subr.mxu0 0.0
    %1504 = vmatpush1.msra.mxu0 0.0
    %1505 = vmatprep.subr.mxu0 0.0
    %1506 = vmatpush1.msra.mxu0 0.0
    %1507 = vmatprep.subr.mxu0 0.0
    %1508 = vmatpush1.msra.mxu0 0.0
    %1509 = vmatprep.subr.mxu0 0.0
    %1510 = vmatpush1.msra.mxu0 0.0
    %1511 = vmatprep.subr.mxu0 0.0
    %1512 = vmatpush1.msra.mxu0 0.0
    %1513 = vmatprep.mubr.f32.mxu0 0.0
    %1514 = vmatmul.mubr.f32.gmra.mrb[0].mxu0 %v1447
    %v1515 = vpop.f32.mrb[0].mxu0
    %v1516 = vadd.f32 0.0, %v1515
    %v1517 = vpop.f32.mrb[0].mxu0
    %1518 = vdwg.mxu0
    %v1519 = vadd.f32 %v1204, %v1516
    %v1520 = vxor.u32 %v1519, 2147483648
    %v1521 = vmul.f32 %v1520, 1.442695
    %v1522 = vpow.pop %v1521
    %v1523 = vadd.f32 %v1522, 1.0
    %v1524 = vrcp.pop %v1523
    %v1525 = vmul.f32 1.0, %v1524
    %v1526 = vmul.f32 %v1525, 2.0
    %v1527 = vsub.f32 %v1526, 1.0
    %v1528 = vmul.f32 %v1525, %v1435
    %1530 = vrot.lane.b32.xlu0 %v1527, 64
    %v1531 = vpop.permute.xlu0 %1530
    %v1533 = vmul.f32 %v1525, %v1531
    %1535 = vrot.lane.b32.xlu0 %v1533, 32
    %v1536 = vpop.permute.xlu0 %1535
    %v1538 = vadd.f32 %v1528, %v1536
    %v1539 = vtanh.pop %v1538
    %1541 = vrot.lane.b32.xlu0 %v1539, 64
    %v1542 = vpop.permute.xlu0 %1541
    %v1544 = vmul.f32 %v1525, %v1542
    %1546 = vrot.lane.b32.xlu0 %v1544, 32
    %v1547 = vpop.permute.xlu0 %1546
    %1549 = vst.msk [vmem:[#allocation2 + $0x10] sm:$0xff] %vm245, %v1547
    %v1550 = vsel %vm245, %v1547, 0
    %1552 = vmatprep.subr.mxu0 0.0
    %1553 = vmatpush1.msra.mxu0 %v1091
    %1554 = vmatprep.subr.mxu0 0.0
    %1555 = vmatpush1.msra.mxu0 %v1092
    %1556 = vmatprep.subr.mxu0 0.0
    %1557 = vmatpush1.msra.mxu0 %v1093
    %1558 = vmatprep.subr.mxu0 0.0
    %1559 = vmatpush1.msra.mxu0 %v1094
    %1560 = vmatprep.subr.mxu0 0.0
    %1561 = vmatpush1.msra.mxu0 0.0
    %1562 = vmatprep.subr.mxu0 0.0
    %1563 = vmatpush1.msra.mxu0 0.0
    %1564 = vmatprep.subr.mxu0 0.0
    %1565 = vmatpush1.msra.mxu0 0.0
    %1566 = vmatprep.subr.mxu0 0.0
    %1567 = vmatpush1.msra.mxu0 0.0
    %1568 = vmatprep.subr.mxu0 0.0
    %1569 = vmatpush1.msra.mxu0 0.0
    %1570 = vmatprep.subr.mxu0 0.0
    %1571 = vmatpush1.msra.mxu0 0.0
    %1572 = vmatprep.subr.mxu0 0.0
    %1573 = vmatpush1.msra.mxu0 0.0
    %1574 = vmatprep.subr.mxu0 0.0
    %1575 = vmatpush1.msra.mxu0 0.0
    %1576 = vmatprep.subr.mxu0 0.0
    %1577 = vmatpush1.msra.mxu0 0.0
    %1578 = vmatprep.subr.mxu0 0.0
    %1579 = vmatpush1.msra.mxu0 0.0
    %1580 = vmatprep.subr.mxu0 0.0
    %1581 = vmatpush1.msra.mxu0 0.0
    %1582 = vmatprep.subr.mxu0 0.0
    %1583 = vmatpush1.msra.mxu0 0.0
    %1584 = vmatprep.subr.mxu0 0.0
    %1585 = vmatpush1.msra.mxu0 0.0
    %1586 = vmatprep.subr.mxu0 0.0
    %1587 = vmatpush1.msra.mxu0 0.0
    %1588 = vmatprep.subr.mxu0 0.0
    %1589 = vmatpush1.msra.mxu0 0.0
    %1590 = vmatprep.subr.mxu0 0.0
    %1591 = vmatpush1.msra.mxu0 0.0
    %1592 = vmatprep.subr.mxu0 0.0
    %1593 = vmatpush1.msra.mxu0 0.0
    %1594 = vmatprep.subr.mxu0 0.0
    %1595 = vmatpush1.msra.mxu0 0.0
    %1596 = vmatprep.subr.mxu0 0.0
    %1597 = vmatpush1.msra.mxu0 0.0
    %1598 = vmatprep.subr.mxu0 0.0
    %1599 = vmatpush1.msra.mxu0 0.0
    %1600 = vmatprep.subr.mxu0 0.0
    %1601 = vmatpush1.msra.mxu0 0.0
    %1602 = vmatprep.subr.mxu0 0.0
    %1603 = vmatpush1.msra.mxu0 0.0
    %1604 = vmatprep.subr.mxu0 0.0
    %1605 = vmatpush1.msra.mxu0 0.0
    %1606 = vmatprep.subr.mxu0 0.0
    %1607 = vmatpush1.msra.mxu0 0.0
    %1608 = vmatprep.subr.mxu0 0.0
    %1609 = vmatpush1.msra.mxu0 0.0
    %1610 = vmatprep.subr.mxu0 0.0
    %1611 = vmatpush1.msra.mxu0 0.0
    %1612 = vmatprep.subr.mxu0 0.0
    %1613 = vmatpush1.msra.mxu0 0.0
    %1614 = vmatprep.subr.mxu0 0.0
    %1615 = vmatpush1.msra.mxu0 0.0
    %1616 = vmatprep.mubr.f32.mxu0 0.0
    %1617 = vmatmul.mubr.f32.gmra.mrb[0].mxu0 %v1550
    %v1618 = vpop.f32.mrb[0].mxu0
    %v1619 = vadd.f32 0.0, %v1618
    %v1620 = vpop.f32.mrb[0].mxu0
    %1621 = vdwg.mxu0
    %v1622 = vadd.f32 %v1209, %v1619
    %v1623 = vxor.u32 %v1622, 2147483648
    %v1624 = vmul.f32 %v1623, 1.442695
    %v1625 = vpow.pop %v1624
    %v1626 = vadd.f32 %v1625, 1.0
    %v1627 = vrcp.pop %v1626
    %v1628 = vmul.f32 1.0, %v1627
    %v1629 = vmul.f32 %v1628, 2.0
    %v1630 = vsub.f32 %v1629, 1.0
    %v1631 = vmul.f32 %v1628, %v1538
    %1633 = vrot.lane.b32.xlu0 %v1630, 64
    %v1634 = vpop.permute.xlu0 %1633
    %v1636 = vmul.f32 %v1628, %v1634
    %1638 = vrot.lane.b32.xlu0 %v1636, 32
    %v1639 = vpop.permute.xlu0 %1638
    %v1641 = vadd.f32 %v1631, %v1639
    %v1642 = vtanh.pop %v1641
    %1644 = vrot.lane.b32.xlu0 %v1642, 64
    %v1645 = vpop.permute.xlu0 %1644
    %v1647 = vmul.f32 %v1628, %v1645
    %1649 = vrot.lane.b32.xlu0 %v1647, 32
    %v1650 = vpop.permute.xlu0 %1649
    %1652 = vst.msk [vmem:[#allocation2 + $0x18] sm:$0xff] %vm245, %v1650
    %v1653 = vsel %vm245, %v1650, 0
    %1655 = vmatprep.subr.mxu0 0.0
    %1656 = vmatpush1.msra.mxu0 %v1091
    %1657 = vmatprep.subr.mxu0 0.0
    %1658 = vmatpush1.msra.mxu0 %v1092
    %1659 = vmatprep.subr.mxu0 0.0
    %1660 = vmatpush1.msra.mxu0 %v1093
    %1661 = vmatprep.subr.mxu0 0.0
    %1662 = vmatpush1.msra.mxu0 %v1094
    %1663 = vmatprep.subr.mxu0 0.0
    %1664 = vmatpush1.msra.mxu0 0.0
    %1665 = vmatprep.subr.mxu0 0.0
    %1666 = vmatpush1.msra.mxu0 0.0
    %1667 = vmatprep.subr.mxu0 0.0
    %1668 = vmatpush1.msra.mxu0 0.0
    %1669 = vmatprep.subr.mxu0 0.0
    %1670 = vmatpush1.msra.mxu0 0.0
    %1671 = vmatprep.subr.mxu0 0.0
    %1672 = vmatpush1.msra.mxu0 0.0
    %1673 = vmatprep.subr.mxu0 0.0
    %1674 = vmatpush1.msra.mxu0 0.0
    %1675 = vmatprep.subr.mxu0 0.0
    %1676 = vmatpush1.msra.mxu0 0.0
    %1677 = vmatprep.subr.mxu0 0.0
    %1678 = vmatpush1.msra.mxu0 0.0
    %1679 = vmatprep.subr.mxu0 0.0
    %1680 = vmatpush1.msra.mxu0 0.0
    %1681 = vmatprep.subr.mxu0 0.0
    %1682 = vmatpush1.msra.mxu0 0.0
    %1683 = vmatprep.subr.mxu0 0.0
    %1684 = vmatpush1.msra.mxu0 0.0
    %1685 = vmatprep.subr.mxu0 0.0
    %1686 = vmatpush1.msra.mxu0 0.0
    %1687 = vmatprep.subr.mxu0 0.0
    %1688 = vmatpush1.msra.mxu0 0.0
    %1689 = vmatprep.subr.mxu0 0.0
    %1690 = vmatpush1.msra.mxu0 0.0
    %1691 = vmatprep.subr.mxu0 0.0
    %1692 = vmatpush1.msra.mxu0 0.0
    %1693 = vmatprep.subr.mxu0 0.0
    %1694 = vmatpush1.msra.mxu0 0.0
    %1695 = vmatprep.subr.mxu0 0.0
    %1696 = vmatpush1.msra.mxu0 0.0
    %1697 = vmatprep.subr.mxu0 0.0
    %1698 = vmatpush1.msra.mxu0 0.0
    %1699 = vmatprep.subr.mxu0 0.0
    %1700 = vmatpush1.msra.mxu0 0.0
    %1701 = vmatprep.subr.mxu0 0.0
    %1702 = vmatpush1.msra.mxu0 0.0
    %1703 = vmatprep.subr.mxu0 0.0
    %1704 = vmatpush1.msra.mxu0 0.0
    %1705 = vmatprep.subr.mxu0 0.0
    %1706 = vmatpush1.msra.mxu0 0.0
    %1707 = vmatprep.subr.mxu0 0.0
    %1708 = vmatpush1.msra.mxu0 0.0
    %1709 = vmatprep.subr.mxu0 0.0
    %1710 = vmatpush1.msra.mxu0 0.0
    %1711 = vmatprep.subr.mxu0 0.0
    %1712 = vmatpush1.msra.mxu0 0.0
    %1713 = vmatprep.subr.mxu0 0.0
    %1714 = vmatpush1.msra.mxu0 0.0
    %1715 = vmatprep.subr.mxu0 0.0
    %1716 = vmatpush1.msra.mxu0 0.0
    %1717 = vmatprep.subr.mxu0 0.0
    %1718 = vmatpush1.msra.mxu0 0.0
    %1719 = vmatprep.mubr.f32.mxu0 0.0
    %1720 = vmatmul.mubr.f32.gmra.mrb[0].mxu0 %v1653
    %v1721 = vpop.f32.mrb[0].mxu0
    %v1722 = vadd.f32 0.0, %v1721
    %v1723 = vpop.f32.mrb[0].mxu0
    %1724 = vdwg.mxu0
    %v1725 = vadd.f32 %v1214, %v1722
    %v1726 = vxor.u32 %v1725, 2147483648
    %v1727 = vmul.f32 %v1726, 1.442695
    %v1728 = vpow.pop %v1727
    %v1729 = vadd.f32 %v1728, 1.0
    %v1730 = vrcp.pop %v1729
    %v1731 = vmul.f32 1.0, %v1730
    %v1732 = vmul.f32 %v1731, 2.0
    %v1733 = vsub.f32 %v1732, 1.0
    %v1734 = vmul.f32 %v1731, %v1641
    %1736 = vrot.lane.b32.xlu0 %v1733, 64
    %v1737 = vpop.permute.xlu0 %1736
    %v1739 = vmul.f32 %v1731, %v1737
    %1741 = vrot.lane.b32.xlu0 %v1739, 32
    %v1742 = vpop.permute.xlu0 %1741
    %v1744 = vadd.f32 %v1734, %v1742
    %v1745 = vtanh.pop %v1744
    %1747 = vrot.lane.b32.xlu0 %v1745, 64
    %v1748 = vpop.permute.xlu0 %1747
    %v1750 = vmul.f32 %v1731, %v1748
    %1752 = vrot.lane.b32.xlu0 %v1750, 32
    %v1753 = vpop.permute.xlu0 %1752
    %1755 = vst.msk [vmem:[#allocation2 + $0x20] sm:$0xff] %vm245, %v1753
    %v1756 = vsel %vm245, %v1753, 0
    %1758 = vmatprep.subr.mxu0 0.0
    %1759 = vmatpush1.msra.mxu0 %v1091
    %1760 = vmatprep.subr.mxu0 0.0
    %1761 = vmatpush1.msra.mxu0 %v1092
    %1762 = vmatprep.subr.mxu0 0.0
    %1763 = vmatpush1.msra.mxu0 %v1093
    %1764 = vmatprep.subr.mxu0 0.0
    %1765 = vmatpush1.msra.mxu0 %v1094
    %1766 = vmatprep.subr.mxu0 0.0
    %1767 = vmatpush1.msra.mxu0 0.0
    %1768 = vmatprep.subr.mxu0 0.0
    %1769 = vmatpush1.msra.mxu0 0.0
    %1770 = vmatprep.subr.mxu0 0.0
    %1771 = vmatpush1.msra.mxu0 0.0
    %1772 = vmatprep.subr.mxu0 0.0
    %1773 = vmatpush1.msra.mxu0 0.0
    %1774 = vmatprep.subr.mxu0 0.0
    %1775 = vmatpush1.msra.mxu0 0.0
    %1776 = vmatprep.subr.mxu0 0.0
    %1777 = vmatpush1.msra.mxu0 0.0
    %1778 = vmatprep.subr.mxu0 0.0
    %1779 = vmatpush1.msra.mxu0 0.0
    %1780 = vmatprep.subr.mxu0 0.0
    %1781 = vmatpush1.msra.mxu0 0.0
    %1782 = vmatprep.subr.mxu0 0.0
    %1783 = vmatpush1.msra.mxu0 0.0
    %1784 = vmatprep.subr.mxu0 0.0
    %1785 = vmatpush1.msra.mxu0 0.0
    %1786 = vmatprep.subr.mxu0 0.0
    %1787 = vmatpush1.msra.mxu0 0.0
    %1788 = vmatprep.subr.mxu0 0.0
    %1789 = vmatpush1.msra.mxu0 0.0
    %1790 = vmatprep.subr.mxu0 0.0
    %1791 = vmatpush1.msra.mxu0 0.0
    %1792 = vmatprep.subr.mxu0 0.0
    %1793 = vmatpush1.msra.mxu0 0.0
    %1794 = vmatprep.subr.mxu0 0.0
    %1795 = vmatpush1.msra.mxu0 0.0
    %1796 = vmatprep.subr.mxu0 0.0
    %1797 = vmatpush1.msra.mxu0 0.0
    %1798 = vmatprep.subr.mxu0 0.0
    %1799 = vmatpush1.msra.mxu0 0.0
    %1800 = vmatprep.subr.mxu0 0.0
    %1801 = vmatpush1.msra.mxu0 0.0
    %1802 = vmatprep.subr.mxu0 0.0
    %1803 = vmatpush1.msra.mxu0 0.0
    %1804 = vmatprep.subr.mxu0 0.0
    %1805 = vmatpush1.msra.mxu0 0.0
    %1806 = vmatprep.subr.mxu0 0.0
    %1807 = vmatpush1.msra.mxu0 0.0
    %1808 = vmatprep.subr.mxu0 0.0
    %1809 = vmatpush1.msra.mxu0 0.0
    %1810 = vmatprep.subr.mxu0 0.0
    %1811 = vmatpush1.msra.mxu0 0.0
    %1812 = vmatprep.subr.mxu0 0.0
    %1813 = vmatpush1.msra.mxu0 0.0
    %1814 = vmatprep.subr.mxu0 0.0
    %1815 = vmatpush1.msra.mxu0 0.0
    %1816 = vmatprep.subr.mxu0 0.0
    %1817 = vmatpush1.msra.mxu0 0.0
    %1818 = vmatprep.subr.mxu0 0.0
    %1819 = vmatpush1.msra.mxu0 0.0
    %1820 = vmatprep.subr.mxu0 0.0
    %1821 = vmatpush1.msra.mxu0 0.0
    %1822 = vmatprep.mubr.f32.mxu0 0.0
    %1823 = vmatmul.mubr.f32.gmra.mrb[0].mxu0 %v1756
    %v1824 = vpop.f32.mrb[0].mxu0
    %v1825 = vadd.f32 0.0, %v1824
    %v1826 = vpop.f32.mrb[0].mxu0
    %1827 = vdwg.mxu0
    %v1828 = vadd.f32 %v1219, %v1825
    %v1829 = vxor.u32 %v1828, 2147483648
    %v1830 = vmul.f32 %v1829, 1.442695
    %v1831 = vpow.pop %v1830
    %v1832 = vadd.f32 %v1831, 1.0
    %v1833 = vrcp.pop %v1832
    %v1834 = vmul.f32 1.0, %v1833
    %v1835 = vmul.f32 %v1834, 2.0
    %v1836 = vsub.f32 %v1835, 1.0
    %v1837 = vmul.f32 %v1834, %v1744
    %1839 = vrot.lane.b32.xlu0 %v1836, 64
    %v1840 = vpop.permute.xlu0 %1839
    %v1842 = vmul.f32 %v1834, %v1840
    %1844 = vrot.lane.b32.xlu0 %v1842, 32
    %v1845 = vpop.permute.xlu0 %1844
    %v1847 = vadd.f32 %v1837, %v1845
    %v1848 = vtanh.pop %v1847
    %1850 = vrot.lane.b32.xlu0 %v1848, 64
    %v1851 = vpop.permute.xlu0 %1850
    %v1853 = vmul.f32 %v1834, %v1851
    %1855 = vrot.lane.b32.xlu0 %v1853, 32
    %v1856 = vpop.permute.xlu0 %1855
    %1858 = vst.msk [vmem:[#allocation2 + $0x28] sm:$0xff] %vm245, %v1856
    %v1859 = vsel %vm245, %v1856, 0
    %1861 = vmatprep.subr.mxu0 0.0
    %1862 = vmatpush1.msra.mxu0 %v1091
    %1863 = vmatprep.subr.mxu0 0.0
    %1864 = vmatpush1.msra.mxu0 %v1092
    %1865 = vmatprep.subr.mxu0 0.0
    %1866 = vmatpush1.msra.mxu0 %v1093
    %1867 = vmatprep.subr.mxu0 0.0
    %1868 = vmatpush1.msra.mxu0 %v1094
    %1869 = vmatprep.subr.mxu0 0.0
    %1870 = vmatpush1.msra.mxu0 0.0
    %1871 = vmatprep.subr.mxu0 0.0
    %1872 = vmatpush1.msra.mxu0 0.0
    %1873 = vmatprep.subr.mxu0 0.0
    %1874 = vmatpush1.msra.mxu0 0.0
    %1875 = vmatprep.subr.mxu0 0.0
    %1876 = vmatpush1.msra.mxu0 0.0
    %1877 = vmatprep.subr.mxu0 0.0
    %1878 = vmatpush1.msra.mxu0 0.0
    %1879 = vmatprep.subr.mxu0 0.0
    %1880 = vmatpush1.msra.mxu0 0.0
    %1881 = vmatprep.subr.mxu0 0.0
    %1882 = vmatpush1.msra.mxu0 0.0
    %1883 = vmatprep.subr.mxu0 0.0
    %1884 = vmatpush1.msra.mxu0 0.0
    %1885 = vmatprep.subr.mxu0 0.0
    %1886 = vmatpush1.msra.mxu0 0.0
    %1887 = vmatprep.subr.mxu0 0.0
    %1888 = vmatpush1.msra.mxu0 0.0
    %1889 = vmatprep.subr.mxu0 0.0
    %1890 = vmatpush1.msra.mxu0 0.0
    %1891 = vmatprep.subr.mxu0 0.0
    %1892 = vmatpush1.msra.mxu0 0.0
    %1893 = vmatprep.subr.mxu0 0.0
    %1894 = vmatpush1.msra.mxu0 0.0
    %1895 = vmatprep.subr.mxu0 0.0
    %1896 = vmatpush1.msra.mxu0 0.0
    %1897 = vmatprep.subr.mxu0 0.0
    %1898 = vmatpush1.msra.mxu0 0.0
    %1899 = vmatprep.subr.mxu0 0.0
    %1900 = vmatpush1.msra.mxu0 0.0
    %1901 = vmatprep.subr.mxu0 0.0
    %1902 = vmatpush1.msra.mxu0 0.0
    %1903 = vmatprep.subr.mxu0 0.0
    %1904 = vmatpush1.msra.mxu0 0.0
    %1905 = vmatprep.subr.mxu0 0.0
    %1906 = vmatpush1.msra.mxu0 0.0
    %1907 = vmatprep.subr.mxu0 0.0
    %1908 = vmatpush1.msra.mxu0 0.0
    %1909 = vmatprep.subr.mxu0 0.0
    %1910 = vmatpush1.msra.mxu0 0.0
    %1911 = vmatprep.subr.mxu0 0.0
    %1912 = vmatpush1.msra.mxu0 0.0
    %1913 = vmatprep.subr.mxu0 0.0
    %1914 = vmatpush1.msra.mxu0 0.0
    %1915 = vmatprep.subr.mxu0 0.0
    %1916 = vmatpush1.msra.mxu0 0.0
    %1917 = vmatprep.subr.mxu0 0.0
    %1918 = vmatpush1.msra.mxu0 0.0
    %1919 = vmatprep.subr.mxu0 0.0
    %1920 = vmatpush1.msra.mxu0 0.0
    %1921 = vmatprep.subr.mxu0 0.0
    %1922 = vmatpush1.msra.mxu0 0.0
    %1923 = vmatprep.subr.mxu0 0.0
    %1924 = vmatpush1.msra.mxu0 0.0
    %1925 = vmatprep.mubr.f32.mxu0 0.0
    %1926 = vmatmul.mubr.f32.gmra.mrb[0].mxu0 %v1859
    %v1927 = vpop.f32.mrb[0].mxu0
    %v1928 = vadd.f32 0.0, %v1927
    %v1929 = vpop.f32.mrb[0].mxu0
    %1930 = vdwg.mxu0
    %v1931 = vadd.f32 %v1224, %v1928
    %v1932 = vxor.u32 %v1931, 2147483648
    %v1933 = vmul.f32 %v1932, 1.442695
    %v1934 = vpow.pop %v1933
    %v1935 = vadd.f32 %v1934, 1.0
    %v1936 = vrcp.pop %v1935
    %v1937 = vmul.f32 1.0, %v1936
    %v1938 = vmul.f32 %v1937, 2.0
    %v1939 = vsub.f32 %v1938, 1.0
    %v1940 = vmul.f32 %v1937, %v1847
    %1942 = vrot.lane.b32.xlu0 %v1939, 64
    %v1943 = vpop.permute.xlu0 %1942
    %v1945 = vmul.f32 %v1937, %v1943
    %1947 = vrot.lane.b32.xlu0 %v1945, 32
    %v1948 = vpop.permute.xlu0 %1947
    %v1950 = vadd.f32 %v1940, %v1948
    %v1951 = vtanh.pop %v1950
    %1953 = vrot.lane.b32.xlu0 %v1951, 64
    %v1954 = vpop.permute.xlu0 %1953
    %v1956 = vmul.f32 %v1937, %v1954
    %1958 = vrot.lane.b32.xlu0 %v1956, 32
    %v1959 = vpop.permute.xlu0 %1958
    %1961 = vst.msk [vmem:[#allocation2 + $0x30] sm:$0xff] %vm245, %v1959
    %v1962 = vsel %vm245, %v1959, 0
    %1964 = vmatprep.subr.mxu0 0.0
    %1965 = vmatpush1.msra.mxu0 %v1091
    %1966 = vmatprep.subr.mxu0 0.0
    %1967 = vmatpush1.msra.mxu0 %v1092
    %1968 = vmatprep.subr.mxu0 0.0
    %1969 = vmatpush1.msra.mxu0 %v1093
    %1970 = vmatprep.subr.mxu0 0.0
    %1971 = vmatpush1.msra.mxu0 %v1094
    %1972 = vmatprep.subr.mxu0 0.0
    %1973 = vmatpush1.msra.mxu0 0.0
    %1974 = vmatprep.subr.mxu0 0.0
    %1975 = vmatpush1.msra.mxu0 0.0
    %1976 = vmatprep.subr.mxu0 0.0
    %1977 = vmatpush1.msra.mxu0 0.0
    %1978 = vmatprep.subr.mxu0 0.0
    %1979 = vmatpush1.msra.mxu0 0.0
    %1980 = vmatprep.subr.mxu0 0.0
    %1981 = vmatpush1.msra.mxu0 0.0
    %1982 = vmatprep.subr.mxu0 0.0
    %1983 = vmatpush1.msra.mxu0 0.0
    %1984 = vmatprep.subr.mxu0 0.0
    %1985 = vmatpush1.msra.mxu0 0.0
    %1986 = vmatprep.subr.mxu0 0.0
    %1987 = vmatpush1.msra.mxu0 0.0
    %1988 = vmatprep.subr.mxu0 0.0
    %1989 = vmatpush1.msra.mxu0 0.0
    %1990 = vmatprep.subr.mxu0 0.0
    %1991 = vmatpush1.msra.mxu0 0.0
    %1992 = vmatprep.subr.mxu0 0.0
    %1993 = vmatpush1.msra.mxu0 0.0
    %1994 = vmatprep.subr.mxu0 0.0
    %1995 = vmatpush1.msra.mxu0 0.0
    %1996 = vmatprep.subr.mxu0 0.0
    %1997 = vmatpush1.msra.mxu0 0.0
    %1998 = vmatprep.subr.mxu0 0.0
    %1999 = vmatpush1.msra.mxu0 0.0
    %2000 = vmatprep.subr.mxu0 0.0
    %2001 = vmatpush1.msra.mxu0 0.0
    %2002 = vmatprep.subr.mxu0 0.0
    %2003 = vmatpush1.msra.mxu0 0.0
    %2004 = vmatprep.subr.mxu0 0.0
    %2005 = vmatpush1.msra.mxu0 0.0
    %2006 = vmatprep.subr.mxu0 0.0
    %2007 = vmatpush1.msra.mxu0 0.0
    %2008 = vmatprep.subr.mxu0 0.0
    %2009 = vmatpush1.msra.mxu0 0.0
    %2010 = vmatprep.subr.mxu0 0.0
    %2011 = vmatpush1.msra.mxu0 0.0
    %2012 = vmatprep.subr.mxu0 0.0
    %2013 = vmatpush1.msra.mxu0 0.0
    %2014 = vmatprep.subr.mxu0 0.0
    %2015 = vmatpush1.msra.mxu0 0.0
    %2016 = vmatprep.subr.mxu0 0.0
    %2017 = vmatpush1.msra.mxu0 0.0
    %2018 = vmatprep.subr.mxu0 0.0
    %2019 = vmatpush1.msra.mxu0 0.0
    %2020 = vmatprep.subr.mxu0 0.0
    %2021 = vmatpush1.msra.mxu0 0.0
    %2022 = vmatprep.subr.mxu0 0.0
    %2023 = vmatpush1.msra.mxu0 0.0
    %2024 = vmatprep.subr.mxu0 0.0
    %2025 = vmatpush1.msra.mxu0 0.0
    %2026 = vmatprep.subr.mxu0 0.0
    %2027 = vmatpush1.msra.mxu0 0.0
    %2028 = vmatprep.mubr.f32.mxu0 0.0
    %2029 = vmatmul.mubr.f32.gmra.mrb[0].mxu0 %v1962
    %v2030 = vpop.f32.mrb[0].mxu0
    %v2031 = vadd.f32 0.0, %v2030
    %v2032 = vpop.f32.mrb[0].mxu0
    %2033 = vdwg.mxu0
    %v2034 = vadd.f32 %v1229, %v2031
    %v2035 = vxor.u32 %v2034, 2147483648
    %v2036 = vmul.f32 %v2035, 1.442695
    %v2037 = vpow.pop %v2036
    %v2038 = vadd.f32 %v2037, 1.0
    %v2039 = vrcp.pop %v2038
    %v2040 = vmul.f32 1.0, %v2039
    %v2041 = vmul.f32 %v2040, 2.0
    %v2042 = vsub.f32 %v2041, 1.0
    %v2043 = vmul.f32 %v2040, %v1950
    %2045 = vrot.lane.b32.xlu0 %v2042, 64
    %v2046 = vpop.permute.xlu0 %2045
    %v2048 = vmul.f32 %v2040, %v2046
    %2050 = vrot.lane.b32.xlu0 %v2048, 32
    %v2051 = vpop.permute.xlu0 %2050
    %v2053 = vadd.f32 %v2043, %v2051
    %v2054 = vtanh.pop %v2053
    %2056 = vrot.lane.b32.xlu0 %v2054, 64
    %v2057 = vpop.permute.xlu0 %2056
    %v2059 = vmul.f32 %v2040, %v2057
    %2061 = vrot.lane.b32.xlu0 %v2059, 32
    %v2062 = vpop.permute.xlu0 %2061
    %2064 = vst.msk [vmem:[#allocation2 + $0x38] sm:$0xff] %vm245, %v2062
    %v2065 = vsel %vm245, %v2062, %v2053
    %s2066 = scalar_lea.vmem [#allocation12], 8
    %2067 = vst.msk [vmem:[%s2066] sm:$0xff] %vm1076, %v2065
    %v2068 = vld [vmem:[#allocation2 + $0x20] sm:$0xff]
    %v2069 = vld [vmem:[#allocation2 + $0x28] sm:$0xff]
    %v2070 = vld [vmem:[#allocation2 + $0x30] sm:$0xff]
    %v2071 = vld [vmem:[#allocation2 + $0x38] sm:$0xff]
    %v2072 = vld [vmem:[%s7] sm:$0xff]
    %v2073 = vld [vmem:[%s7 + $0x8] sm:$0xff]
    %v2074 = vld [vmem:[%s7 + $0x10] sm:$0xff]
    %v2075 = vld [vmem:[%s7 + $0x18] sm:$0xff]
    %v2076 = vld [vmem:[%s8] sm:$0x1]
    %v2078 = vlaneseq
    %v2079 = vshrl.u32 %v2078, 7
    %v2080 = vsub.s32 0, %v2079
    %v2081 = vrot.slane %v2076, %v2080
    %v2084 = vsel %vm245, %v2068, 0
    %v2087 = vsel %vm245, %v2069, 0
    %v2090 = vsel %vm245, %v2070, 0
    %v2093 = vsel %vm245, %v2071, 0
    %2095 = vmatprep.subr.mxu0 0.0
    %2096 = vmatpush1.msra.mxu0 %v2072
    %2097 = vmatprep.subr.mxu0 0.0
    %2098 = vmatpush1.msra.mxu0 %v2073
    %2099 = vmatprep.subr.mxu0 0.0
    %2100 = vmatpush1.msra.mxu0 %v2074
    %2101 = vmatprep.subr.mxu0 0.0
    %2102 = vmatpush1.msra.mxu0 %v2075
    %2103 = vmatprep.subr.mxu0 0.0
    %2104 = vmatpush1.msra.mxu0 0.0
    %2105 = vmatprep.subr.mxu0 0.0
    %2106 = vmatpush1.msra.mxu0 0.0
    %2107 = vmatprep.subr.mxu0 0.0
    %2108 = vmatpush1.msra.mxu0 0.0
    %2109 = vmatprep.subr.mxu0 0.0
    %2110 = vmatpush1.msra.mxu0 0.0
    %2111 = vmatprep.subr.mxu0 0.0
    %2112 = vmatpush1.msra.mxu0 0.0
    %2113 = vmatprep.subr.mxu0 0.0
    %2114 = vmatpush1.msra.mxu0 0.0
    %2115 = vmatprep.subr.mxu0 0.0
    %2116 = vmatpush1.msra.mxu0 0.0
    %2117 = vmatprep.subr.mxu0 0.0
    %2118 = vmatpush1.msra.mxu0 0.0
    %2119 = vmatprep.subr.mxu0 0.0
    %2120 = vmatpush1.msra.mxu0 0.0
    %2121 = vmatprep.subr.mxu0 0.0
    %2122 = vmatpush1.msra.mxu0 0.0
    %2123 = vmatprep.subr.mxu0 0.0
    %2124 = vmatpush1.msra.mxu0 0.0
    %2125 = vmatprep.subr.mxu0 0.0
    %2126 = vmatpush1.msra.mxu0 0.0
    %2127 = vmatprep.subr.mxu0 0.0
    %2128 = vmatpush1.msra.mxu0 0.0
    %2129 = vmatprep.subr.mxu0 0.0
    %2130 = vmatpush1.msra.mxu0 0.0
    %2131 = vmatprep.subr.mxu0 0.0
    %2132 = vmatpush1.msra.mxu0 0.0
    %2133 = vmatprep.subr.mxu0 0.0
    %2134 = vmatpush1.msra.mxu0 0.0
    %2135 = vmatprep.subr.mxu0 0.0
    %2136 = vmatpush1.msra.mxu0 0.0
    %2137 = vmatprep.subr.mxu0 0.0
    %2138 = vmatpush1.msra.mxu0 0.0
    %2139 = vmatprep.subr.mxu0 0.0
    %2140 = vmatpush1.msra.mxu0 0.0
    %2141 = vmatprep.subr.mxu0 0.0
    %2142 = vmatpush1.msra.mxu0 0.0
    %2143 = vmatprep.subr.mxu0 0.0
    %2144 = vmatpush1.msra.mxu0 0.0
    %2145 = vmatprep.subr.mxu0 0.0
    %2146 = vmatpush1.msra.mxu0 0.0
    %2147 = vmatprep.subr.mxu0 0.0
    %2148 = vmatpush1.msra.mxu0 0.0
    %2149 = vmatprep.subr.mxu0 0.0
    %2150 = vmatpush1.msra.mxu0 0.0
    %2151 = vmatprep.subr.mxu0 0.0
    %2152 = vmatpush1.msra.mxu0 0.0
    %2153 = vmatprep.subr.mxu0 0.0
    %2154 = vmatpush1.msra.mxu0 0.0
    %2155 = vmatprep.subr.mxu0 0.0
    %2156 = vmatpush1.msra.mxu0 0.0
    %2157 = vmatprep.subr.mxu0 0.0
    %2158 = vmatpush1.msra.mxu0 0.0
    %2159 = vmatprep.mubr.f32.mxu0 0.0
    %2160 = vmatmul.mubr.f32.gmra.mrb[0].mxu0 %v2084
    %v2161 = vpop.f32.mrb[0].mxu0
    %v2162 = vadd.f32 %v2081, %v2161
    %v2163 = vpop.f32.mrb[0].mxu0
    %2164 = vmatprep.mubr.f32.mxu0 0.0
    %2165 = vmatmul.mubr.f32.gmra.mrb[0].mxu0 %v2087
    %v2166 = vpop.f32.mrb[0].mxu0
    %v2167 = vadd.f32 %v2081, %v2166
    %v2168 = vpop.f32.mrb[0].mxu0
    %2169 = vmatprep.mubr.f32.mxu0 0.0
    %2170 = vmatmul.mubr.f32.gmra.mrb[0].mxu0 %v2090
    %v2171 = vpop.f32.mrb[0].mxu0
    %v2172 = vadd.f32 %v2081, %v2171
    %v2173 = vpop.f32.mrb[0].mxu0
    %2174 = vmatprep.mubr.f32.mxu0 0.0
    %2175 = vmatmul.mubr.f32.gmra.mrb[0].mxu0 %v2093
    %v2176 = vpop.f32.mrb[0].mxu0
    %v2177 = vadd.f32 %v2081, %v2176
    %v2178 = vpop.f32.mrb[0].mxu0
    %2179 = vdwg.mxu0
    %2180 = vst [vmem:[#allocation11] sm:$0xff] %v2162
    %2181 = vst [vmem:[#allocation11 + $0x8] sm:$0xff] %v2167
    %2182 = vst [vmem:[#allocation11 + $0x10] sm:$0xff] %v2172
    %2183 = vst [vmem:[#allocation11 + $0x18] sm:$0xff] %v2177
    // Predicated region
    $region54: #{tpu_custom_call.1} parent=1 // pred_check
      _
    $region55: #{tpu_custom_call.1} parent=1 // pred_check_branch
      %2185 = sbr.rel (0) target = $region57
    $region56: #{tpu_custom_call.1} parent=1 // pred_region
      %s2187 = ssub.s32 512, 512
      %2188 = vsyncadd [#allocation5], %s2187
      %s2189 = sshll.u32 [#allocation11], 4
      %s2190 = int_to_ptr.vmem [resolvable:$true] %s2189
      %2195 = dma.vmem_to_hbm [thread:$0]  %s2190, 512, %s9, [#allocation5], 128, 128, 8
    $region57: #{tpu_custom_call.1} parent=1 // pred_fallthru
      _
    // Predicated region
    $region58: #{tpu_custom_call.1} parent=1 // pred_check
      _
    $region59: #{tpu_custom_call.1} parent=1 // pred_check_branch
      %2197 = sbr.rel (0) target = $region61
    $region60: #{tpu_custom_call.1} parent=1 // pred_region
      %s2199 = ssub.s32 256, 256
      %2200 = vsyncadd [#allocation13], %s2199
      %s2201 = sshll.u32 [#allocation12], 4
      %s2202 = int_to_ptr.vmem [resolvable:$true] %s2201
      %2207 = dma.vmem_to_hbm [thread:$0]  %s2202, 256, %s10, [#allocation13], 128, 128, 8
    $region61: #{tpu_custom_call.1} parent=1 // pred_fallthru
      _
    // Predicated region
    $region62: #{tpu_custom_call.1} parent=1 // pred_check
      _
    $region63: #{tpu_custom_call.1} parent=1 // pred_check_branch
      %2209 = sbr.rel (0) target = $region65
    $region64: #{tpu_custom_call.1} parent=1 // pred_region
      %2210 = dma.done [#allocation5], 512
    $region65: #{tpu_custom_call.1} parent=1 // pred_fallthru
      _
    // Predicated region
    $region66: #{tpu_custom_call.1} parent=1 // pred_check
      _
    $region67: #{tpu_custom_call.1} parent=1 // pred_check_branch
      %2212 = sbr.rel (0) target = $region69
    $region68: #{tpu_custom_call.1} parent=1 // pred_region
      %2213 = dma.done [#allocation13], 256
    $region69: #{tpu_custom_call.1} parent=1 // pred_fallthru
      _
    %2214 = vsyncpa [#allocation4], 1
    %2215 = vsyncpa [#allocation7], 1
    %2216 = vsyncpa [#allocation10], 1
    %2217 = vsyncpa [#allocation5], 1
    %2218 = vsyncpa [#allocation13], 1

</llo_original>
